<compile_context>
chip_gen: v5e
topology: v5e:2x2
jax: 0.10.0
libtpu: 0.0.40
codegen_flags: <defaults>
</compile_context>

<pallas_src>
import math
import functools

import jax
import jax.numpy as jnp
from jax import lax
from jax.experimental import pallas as pl
from jax.experimental.pallas import tpu as pltpu


def _round_up(x, m):
    return ((x + m - 1) // m) * m


# ----------------------------- fused Pallas kernel ---------------------------

def gcnii_fused_kernel(alpha, n_layer, n_class,
                       feat_ref, lin_w_ref, lin_b_ref,
                       adj_ref, gcw_ref, fc_w_ref, fc_b_ref,
                       out_ref):
    """Whole GCNII forward in a single grid step.

    Inputs are pre-processed in the wrapper:
      adj_ref    = (1 - alpha) * adj                   (bf16, N x N)
      gcw_ref[l] = beta_l * W_l + (1 - beta_l) * I     (bf16, padded Hp x Hp)
    Biases are f32 (added after the f32 MXU accumulation).
    """
    bf16 = jnp.bfloat16

    # ---- prologue: h = h0 = relu(feature @ lin_w + lin_b) ----
    y = jnp.dot(feat_ref[...], lin_w_ref[...],
                preferred_element_type=jnp.float32)
    h0 = jnp.maximum(y + lin_b_ref[...], 0.0)          # f32 (N, Hp)
    h0a = alpha * h0                                    # alpha * h0, f32, reused every layer

    # ---- layer loop (unrolled; n_layer is a static Python int) ----
    # support = (1-alpha) * (adj @ h) + alpha * h0   (adj pre-scaled by 1-alpha)
    # h       = relu(support @ (beta*W + (1-beta)*I))  (identity folded into W_eff)
    h = h0
    for l in range(n_layer):
        support = jnp.dot(adj_ref[...], h.astype(bf16),
                          preferred_element_type=jnp.float32) + h0a
        h = jnp.maximum(
            jnp.dot(support.astype(bf16), gcw_ref[l],
                    preferred_element_type=jnp.float32),
            0.0)

    # ---- epilogue: log_softmax(h @ fc_w + fc_b) ----
    logits = jnp.dot(h.astype(bf16), fc_w_ref[...],
                     preferred_element_type=jnp.float32) + fc_b_ref[...]
    # Mask the zero-padded class columns out of the softmax.
    col = lax.broadcasted_iota(jnp.int32, logits.shape, 1)
    logits = jnp.where(col < n_class, logits, -1e30)
    m = jnp.max(logits, axis=-1, keepdims=True)
    z = logits - m
    lse = jnp.log(jnp.sum(jnp.exp(z), axis=-1, keepdims=True))
    out_ref[...] = z - lse


# ------------------------- parameter prep + wrapper ---------------------------

def init_gcnii_params(key, n_layer, n_feature, n_hidden, n_class):
    ks = jax.random.split(key, 4 + n_layer)
    return {
        # stored pre-transposed relative to torch.nn.Linear: (in, out)
        "lin_w": jax.random.normal(ks[0], (n_feature, n_hidden), jnp.float32) * 0.1,
        "lin_b": jax.random.normal(ks[1], (1, n_hidden), jnp.float32) * 0.1,
        "fc_w": jax.random.normal(ks[2], (n_hidden, n_class), jnp.float32) * 0.1,
        "fc_b": jax.random.normal(ks[3], (1, n_class), jnp.float32) * 0.1,
        "gc_w": [
            jax.random.normal(ks[4 + i], (n_hidden, n_hidden), jnp.float32) * 0.1
            for i in range(n_layer)
        ],
    }


def prepare_gcnii_operands(params, adj, *, n_layer, alpha, theta):
    """One-time parameter preprocessing: pad to lane-dense dims, fold alpha/beta,
    cast MXU operands to bf16 (biases stay f32 since they add post-accumulation)."""
    f32, bf16 = jnp.float32, jnp.bfloat16
    F, H = params["lin_w"].shape
    C = params["fc_w"].shape[1]
    Hp = _round_up(H, 128)
    Cp = _round_up(C, 128)

    lin_w = jnp.zeros((F, Hp), f32).at[:, :H].set(params["lin_w"])
    lin_b = jnp.zeros((1, Hp), f32).at[:, :H].set(params["lin_b"])
    fc_w = jnp.zeros((Hp, Cp), f32).at[:H, :C].set(params["fc_w"])
    fc_b = jnp.zeros((1, Cp), f32).at[:, :C].set(params["fc_b"])

    gcw = jnp.zeros((n_layer, Hp, Hp), f32).at[:, :H, :H].set(
        jnp.stack(params["gc_w"]))
    betas = jnp.array(
        [math.log(theta / float(l + 1) + 1.0) for l in range(n_layer)],
        f32).reshape(n_layer, 1, 1)
    gcw_eff = betas * gcw + (1.0 - betas) * jnp.eye(Hp, dtype=f32)

    adj_scaled = (1.0 - float(alpha)) * adj
    # TODO(synk): on v7x, optionally cast adj_scaled to fp8 (entries in [0,1)) to
    # halve the resident adj footprint on the 64 MiB chip; keep bf16 on v5e/v6e.

    return {
        "lin_w": lin_w.astype(bf16),
        "lin_b": lin_b,                  # f32
        "adj": adj_scaled.astype(bf16),
        "gcw": gcw_eff.astype(bf16),
        "fc_w": fc_w.astype(bf16),
        "fc_b": fc_b,                    # f32
        "n_class": C,
        "hp": Hp,
        "cp": Cp,
    }


def gcnii_forward(ops, feature, *, n_layer, alpha):
    """Fused GCNII inference forward: one pallas_call, single grid step."""
    assert n_layer >= 1
    N, F = feature.shape
    Hp, Cp, C = ops["hp"], ops["cp"], ops["n_class"]

    const2 = lambda i: (0, 0)        # every operand is resident for the whole call
    const3 = lambda i: (0, 0, 0)
    kernel = functools.partial(gcnii_fused_kernel, float(alpha), n_layer, C)

    # Advisory cost estimate so XLA schedules neighbours sensibly.
    flops = (2 * N * F * Hp                              # input linear
             + n_layer * (2 * N * N * Hp + 2 * N * Hp * Hp)  # adj@h + support@W_eff
             + 2 * N * Hp * Cp)                          # fc
    transcendentals = N * Cp + N                         # exp + log in softmax
    bytes_accessed = (N * F * 2 + F * Hp * 2 + Hp * 4 + N * N * 2
                      + n_layer * Hp * Hp * 2 + Hp * Cp * 2 + Cp * 4
                      + N * Cp * 4)

    out = pl.pallas_call(
        kernel,
        out_shape=jax.ShapeDtypeStruct((N, Cp), jnp.float32),
        grid_spec=pltpu.PrefetchScalarGridSpec(
            num_scalar_prefetch=0,
            grid=(1,),                                    # single step: no per-layer
            in_specs=[                                    # pipeline overhead
                pl.BlockSpec((N, F), const2),             # feature
                pl.BlockSpec((F, Hp), const2),            # lin_w
                pl.BlockSpec((1, Hp), const2),            # lin_b
                pl.BlockSpec((N, N), const2),             # (1-alpha)*adj
                pl.BlockSpec((n_layer, Hp, Hp), const3),  # full W_eff stack, resident
                pl.BlockSpec((Hp, Cp), const2),           # fc_w
                pl.BlockSpec((1, Cp), const2),            # fc_b
            ],
            out_specs=pl.BlockSpec((N, Cp), const2),
        ),
        compiler_params=pltpu.CompilerParams(
            dimension_semantics=("arbitrary",),
            # vmem_limit_bytes left at default: total resident footprint here is
            # well under 1 MiB. Set it explicitly for the future tiled adj path.
        ),
        cost_estimate=pl.CostEstimate(
            flops=flops,
            transcendentals=transcendentals,
            bytes_accessed=bytes_accessed),
    )(feature.astype(jnp.bfloat16), ops["lin_w"], ops["lin_b"],
      ops["adj"], ops["gcw"], ops["fc_w"], ops["fc_b"])

    return out[:, :C]


# -------------------------- pure-JAX reference (f32) --------------------------

def gcnii_reference(params, feature, adj, *, n_layer, alpha, theta):
    h0 = jax.nn.relu(feature @ params["lin_w"] + params["lin_b"])
    h = h0
    for l in range(n_layer):
        beta = math.log(theta / float(l + 1) + 1.0)
        hi = adj @ h
        support = (1.0 - alpha) * hi + alpha * h0
        h = jax.nn.relu(beta * (support @ params["gc_w"][l]) + (1.0 - beta) * support)
    logits = h @ params["fc_w"] + params["fc_b"]
    return jax.nn.log_softmax(logits, axis=-1)


# ---------------------------------- main --------------------------------------

if __name__ == "__main__":
    N_NODES = 128
    N_FEATURE = 64
    N_HIDDEN = 64      # padded to 128 internally (exact, zero-pad)
    N_CLASS = 16       # padded to 128 internally (masked in log-softmax)
    N_LAYER = 4
    ALPHA = 0.1
    THETA = 0.5
    # dropout rate of the original module is irrelevant at inference time.

    key = jax.random.PRNGKey(0)
    k_feat, k_adj, k_params = jax.random.split(key, 3)

    feature = jax.random.normal(k_feat, (N_NODES, N_FEATURE), jnp.float32)

    # Deterministic symmetric "normalized adjacency with self-loops".
    a = jax.random.uniform(k_adj, (N_NODES, N_NODES), jnp.float32)
    a = (a > 0.9).astype(jnp.float32)
    a = jnp.maximum(a, a.T) + jnp.eye(N_NODES, dtype=jnp.float32)
    deg = jnp.sum(a, axis=1)
    d_inv_sqrt = 1.0 / jnp.sqrt(deg)
    adj = a * d_inv_sqrt[:, None] * d_inv_sqrt[None, :]

    params = init_gcnii_params(k_params, N_LAYER, N_FEATURE, N_HIDDEN, N_CLASS)

    ops = prepare_gcnii_operands(params, adj, n_layer=N_LAYER,
                                 alpha=ALPHA, theta=THETA)
    out = gcnii_forward(ops, feature, n_layer=N_LAYER, alpha=ALPHA)
    out = jax.block_until_ready(out)

    assert out.shape == (N_NODES, N_CLASS)
    # log-softmax rows should sum to ~1 after exp
    row_sums = jnp.sum(jnp.exp(out), axis=1)
    assert bool(jnp.all(jnp.abs(row_sums - 1.0) < 1e-3))

    # Loose check vs f32 reference (kernel uses bf16 MXU operands).
    ref = gcnii_reference(params, feature, adj, n_layer=N_LAYER,
                          alpha=ALPHA, theta=THETA)
    max_diff = float(jnp.max(jnp.abs(out - ref)))
    assert max_diff < 0.25, f"max |out - ref| = {max_diff}"

    print("KERNEL_OK")
</pallas_src>

<mosaic_0001>
module attributes {stable_mosaic.version = 11 : i64} {
  func.func @gcnii_fused_kernel(%arg0: i32, %arg1: memref<128x64xbf16, #tpu.memory_space<vmem>>, %arg2: memref<64x128xbf16, #tpu.memory_space<vmem>>, %arg3: memref<1x128xf32, #tpu.memory_space<vmem>>, %arg4: memref<128x128xbf16, #tpu.memory_space<vmem>>, %arg5: memref<4x128x128xbf16, #tpu.memory_space<vmem>>, %arg6: memref<128x128xbf16, #tpu.memory_space<vmem>>, %arg7: memref<1x128xf32, #tpu.memory_space<vmem>>, %arg8: memref<128x128xf32, #tpu.memory_space<vmem>>) attributes {dimension_semantics = [#tpu.dimension_semantics<arbitrary>], iteration_bounds = array<i64: 1>, scalar_prefetch = 0 : i64, scratch_operands = 0 : i64, tpu.core_type = #tpu.core_type<tc>, window_params = [{pipeline_mode = #tpu.pipeline_mode<synchronous>, transform_indices = @transform_0, window_bounds = array<i64: 128, 64>}, {pipeline_mode = #tpu.pipeline_mode<synchronous>, transform_indices = @transform_1, window_bounds = array<i64: 64, 128>}, {pipeline_mode = #tpu.pipeline_mode<synchronous>, transform_indices = @transform_2, window_bounds = array<i64: 1, 128>}, {pipeline_mode = #tpu.pipeline_mode<synchronous>, transform_indices = @transform_3, window_bounds = array<i64: 128, 128>}, {pipeline_mode = #tpu.pipeline_mode<synchronous>, transform_indices = @transform_4, window_bounds = array<i64: 4, 128, 128>}, {pipeline_mode = #tpu.pipeline_mode<synchronous>, transform_indices = @transform_5, window_bounds = array<i64: 128, 128>}, {pipeline_mode = #tpu.pipeline_mode<synchronous>, transform_indices = @transform_6, window_bounds = array<i64: 1, 128>}, {pipeline_mode = #tpu.pipeline_mode<synchronous>, transform_indices = @transform_7, window_bounds = array<i64: 128, 128>}]} {
    %c0 = arith.constant 0 : index
    %c0_0 = arith.constant 0 : index
    %0 = vector.load %arg1[%c0, %c0_0] : memref<128x64xbf16, #tpu.memory_space<vmem>>, vector<128x64xbf16>
    %c0_1 = arith.constant 0 : index
    %c0_2 = arith.constant 0 : index
    %1 = vector.load %arg2[%c0_1, %c0_2] : memref<64x128xbf16, #tpu.memory_space<vmem>>, vector<64x128xbf16>
    %cst = arith.constant dense<0.000000e+00> : vector<128x128xf32>
    %2 = tpu.matmul %0, %1, %cst {dimension_numbers = #tpu.dot_dimension_numbers<[1], [0], [0], [1], [0, 0, 1, 1], [], []>} : vector<128x64xbf16>, vector<64x128xbf16>, vector<128x128xf32> -> vector<128x128xf32>
    %c0_3 = arith.constant 0 : index
    %c0_4 = arith.constant 0 : index
    %3 = vector.load %arg3[%c0_3, %c0_4] : memref<1x128xf32, #tpu.memory_space<vmem>>, vector<1x128xf32>
    %4 = vector.broadcast %3 : vector<1x128xf32> to vector<128x128xf32>
    %5 = arith.addf %2, %4 : vector<128x128xf32>
    %cst_5 = arith.constant 0.000000e+00 : f32
    %6 = vector.broadcast %cst_5 : f32 to vector<128x128xf32>
    %7 = arith.maximumf %5, %6 : vector<128x128xf32>
    %cst_6 = arith.constant 1.000000e-01 : f32
    %8 = vector.broadcast %cst_6 : f32 to vector<128x128xf32>
    %9 = arith.mulf %8, %7 : vector<128x128xf32>
    %c0_7 = arith.constant 0 : index
    %c0_8 = arith.constant 0 : index
    %10 = vector.load %arg4[%c0_7, %c0_8] : memref<128x128xbf16, #tpu.memory_space<vmem>>, vector<128x128xbf16>
    %11 = arith.truncf %7 : vector<128x128xf32> to vector<128x128xbf16>
    %cst_9 = arith.constant dense<0.000000e+00> : vector<128x128xf32>
    %12 = tpu.matmul %10, %11, %cst_9 {dimension_numbers = #tpu.dot_dimension_numbers<[1], [0], [0], [1], [0, 0, 1, 1], [], []>} : vector<128x128xbf16>, vector<128x128xbf16>, vector<128x128xf32> -> vector<128x128xf32>
    %13 = arith.addf %12, %9 : vector<128x128xf32>
    %14 = arith.truncf %13 : vector<128x128xf32> to vector<128x128xbf16>
    %c0_10 = arith.constant 0 : index
    %c0_11 = arith.constant 0 : index
    %c0_12 = arith.constant 0 : index
    %15 = vector.load %arg5[%c0_10, %c0_11, %c0_12] : memref<4x128x128xbf16, #tpu.memory_space<vmem>>, vector<1x128x128xbf16>
    %16 = vector.shape_cast %15 : vector<1x128x128xbf16> to vector<128x128xbf16>
    %cst_13 = arith.constant dense<0.000000e+00> : vector<128x128xf32>
    %17 = tpu.matmul %14, %16, %cst_13 {dimension_numbers = #tpu.dot_dimension_numbers<[1], [0], [0], [1], [0, 0, 1, 1], [], []>} : vector<128x128xbf16>, vector<128x128xbf16>, vector<128x128xf32> -> vector<128x128xf32>
    %cst_14 = arith.constant 0.000000e+00 : f32
    %18 = vector.broadcast %cst_14 : f32 to vector<128x128xf32>
    %19 = arith.maximumf %17, %18 : vector<128x128xf32>
    %c0_15 = arith.constant 0 : index
    %c0_16 = arith.constant 0 : index
    %20 = vector.load %arg4[%c0_15, %c0_16] : memref<128x128xbf16, #tpu.memory_space<vmem>>, vector<128x128xbf16>
    %21 = arith.truncf %19 : vector<128x128xf32> to vector<128x128xbf16>
    %cst_17 = arith.constant dense<0.000000e+00> : vector<128x128xf32>
    %22 = tpu.matmul %20, %21, %cst_17 {dimension_numbers = #tpu.dot_dimension_numbers<[1], [0], [0], [1], [0, 0, 1, 1], [], []>} : vector<128x128xbf16>, vector<128x128xbf16>, vector<128x128xf32> -> vector<128x128xf32>
    %23 = arith.addf %22, %9 : vector<128x128xf32>
    %24 = arith.truncf %23 : vector<128x128xf32> to vector<128x128xbf16>
    %c1 = arith.constant 1 : index
    %c0_18 = arith.constant 0 : index
    %c0_19 = arith.constant 0 : index
    %25 = vector.load %arg5[%c1, %c0_18, %c0_19] : memref<4x128x128xbf16, #tpu.memory_space<vmem>>, vector<1x128x128xbf16>
    %26 = vector.shape_cast %25 : vector<1x128x128xbf16> to vector<128x128xbf16>
    %cst_20 = arith.constant dense<0.000000e+00> : vector<128x128xf32>
    %27 = tpu.matmul %24, %26, %cst_20 {dimension_numbers = #tpu.dot_dimension_numbers<[1], [0], [0], [1], [0, 0, 1, 1], [], []>} : vector<128x128xbf16>, vector<128x128xbf16>, vector<128x128xf32> -> vector<128x128xf32>
    %cst_21 = arith.constant 0.000000e+00 : f32
    %28 = vector.broadcast %cst_21 : f32 to vector<128x128xf32>
    %29 = arith.maximumf %27, %28 : vector<128x128xf32>
    %c0_22 = arith.constant 0 : index
    %c0_23 = arith.constant 0 : index
    %30 = vector.load %arg4[%c0_22, %c0_23] : memref<128x128xbf16, #tpu.memory_space<vmem>>, vector<128x128xbf16>
    %31 = arith.truncf %29 : vector<128x128xf32> to vector<128x128xbf16>
    %cst_24 = arith.constant dense<0.000000e+00> : vector<128x128xf32>
    %32 = tpu.matmul %30, %31, %cst_24 {dimension_numbers = #tpu.dot_dimension_numbers<[1], [0], [0], [1], [0, 0, 1, 1], [], []>} : vector<128x128xbf16>, vector<128x128xbf16>, vector<128x128xf32> -> vector<128x128xf32>
    %33 = arith.addf %32, %9 : vector<128x128xf32>
    %34 = arith.truncf %33 : vector<128x128xf32> to vector<128x128xbf16>
    %c2 = arith.constant 2 : index
    %c0_25 = arith.constant 0 : index
    %c0_26 = arith.constant 0 : index
    %35 = vector.load %arg5[%c2, %c0_25, %c0_26] : memref<4x128x128xbf16, #tpu.memory_space<vmem>>, vector<1x128x128xbf16>
    %36 = vector.shape_cast %35 : vector<1x128x128xbf16> to vector<128x128xbf16>
    %cst_27 = arith.constant dense<0.000000e+00> : vector<128x128xf32>
    %37 = tpu.matmul %34, %36, %cst_27 {dimension_numbers = #tpu.dot_dimension_numbers<[1], [0], [0], [1], [0, 0, 1, 1], [], []>} : vector<128x128xbf16>, vector<128x128xbf16>, vector<128x128xf32> -> vector<128x128xf32>
    %cst_28 = arith.constant 0.000000e+00 : f32
    %38 = vector.broadcast %cst_28 : f32 to vector<128x128xf32>
    %39 = arith.maximumf %37, %38 : vector<128x128xf32>
    %c0_29 = arith.constant 0 : index
    %c0_30 = arith.constant 0 : index
    %40 = vector.load %arg4[%c0_29, %c0_30] : memref<128x128xbf16, #tpu.memory_space<vmem>>, vector<128x128xbf16>
    %41 = arith.truncf %39 : vector<128x128xf32> to vector<128x128xbf16>
    %cst_31 = arith.constant dense<0.000000e+00> : vector<128x128xf32>
    %42 = tpu.matmul %40, %41, %cst_31 {dimension_numbers = #tpu.dot_dimension_numbers<[1], [0], [0], [1], [0, 0, 1, 1], [], []>} : vector<128x128xbf16>, vector<128x128xbf16>, vector<128x128xf32> -> vector<128x128xf32>
    %43 = arith.addf %42, %9 : vector<128x128xf32>
    %44 = arith.truncf %43 : vector<128x128xf32> to vector<128x128xbf16>
    %c3 = arith.constant 3 : index
    %c0_32 = arith.constant 0 : index
    %c0_33 = arith.constant 0 : index
    %45 = vector.load %arg5[%c3, %c0_32, %c0_33] : memref<4x128x128xbf16, #tpu.memory_space<vmem>>, vector<1x128x128xbf16>
    %46 = vector.shape_cast %45 : vector<1x128x128xbf16> to vector<128x128xbf16>
    %cst_34 = arith.constant dense<0.000000e+00> : vector<128x128xf32>
    %47 = tpu.matmul %44, %46, %cst_34 {dimension_numbers = #tpu.dot_dimension_numbers<[1], [0], [0], [1], [0, 0, 1, 1], [], []>} : vector<128x128xbf16>, vector<128x128xbf16>, vector<128x128xf32> -> vector<128x128xf32>
    %cst_35 = arith.constant 0.000000e+00 : f32
    %48 = vector.broadcast %cst_35 : f32 to vector<128x128xf32>
    %49 = arith.maximumf %47, %48 : vector<128x128xf32>
    %50 = arith.truncf %49 : vector<128x128xf32> to vector<128x128xbf16>
    %c0_36 = arith.constant 0 : index
    %c0_37 = arith.constant 0 : index
    %51 = vector.load %arg6[%c0_36, %c0_37] : memref<128x128xbf16, #tpu.memory_space<vmem>>, vector<128x128xbf16>
    %cst_38 = arith.constant dense<0.000000e+00> : vector<128x128xf32>
    %52 = tpu.matmul %50, %51, %cst_38 {dimension_numbers = #tpu.dot_dimension_numbers<[1], [0], [0], [1], [0, 0, 1, 1], [], []>} : vector<128x128xbf16>, vector<128x128xbf16>, vector<128x128xf32> -> vector<128x128xf32>
    %c0_39 = arith.constant 0 : index
    %c0_40 = arith.constant 0 : index
    %53 = vector.load %arg7[%c0_39, %c0_40] : memref<1x128xf32, #tpu.memory_space<vmem>>, vector<1x128xf32>
    %54 = vector.broadcast %53 : vector<1x128xf32> to vector<128x128xf32>
    %55 = arith.addf %52, %54 : vector<128x128xf32>
    %56 = tpu.iota {dimensions = array<i32: 1>} : vector<128x128xi32>
    %c16_i32 = arith.constant 16 : i32
    %57 = vector.broadcast %c16_i32 : i32 to vector<128x128xi32>
    %58 = arith.cmpi slt, %56, %57 : vector<128x128xi32>
    %cst_41 = arith.constant -1.000000e+30 : f32
    %59 = vector.broadcast %cst_41 : f32 to vector<128x128xf32>
    %60 = arith.select %58, %55, %59 : vector<128x128xi1>, vector<128x128xf32>
    %cst_42 = arith.constant dense<0xFF800000> : vector<128xf32>
    %61 = vector.multi_reduction <maximumf>, %60, %cst_42 [1] : vector<128x128xf32> to vector<128xf32>
    %62 = vector.shape_cast %61 : vector<128xf32> to vector<128x1xf32>
    %63 = vector.broadcast %62 : vector<128x1xf32> to vector<128x128xf32>
    %64 = arith.subf %60, %63 : vector<128x128xf32>
    %65 = math.exp %64 : vector<128x128xf32>
    %cst_43 = arith.constant dense<0.000000e+00> : vector<128xf32>
    %66 = vector.multi_reduction <add>, %65, %cst_43 [1] : vector<128x128xf32> to vector<128xf32>
    %67 = vector.shape_cast %66 : vector<128xf32> to vector<128x1xf32>
    %68 = math.log %67 : vector<128x1xf32>
    %69 = vector.broadcast %68 : vector<128x1xf32> to vector<128x128xf32>
    %70 = arith.subf %64, %69 : vector<128x128xf32>
    %c0_44 = arith.constant 0 : index
    %c0_45 = arith.constant 0 : index
    %71 = vector.load %arg8[%c0_44, %c0_45] : memref<128x128xf32, #tpu.memory_space<vmem>>, vector<128x128xf32>
    tpu.vector_store %arg8[%c0_44, %c0_45], %70 {strides = array<i32>} : memref<128x128xf32, #tpu.memory_space<vmem>>, vector<128x128xf32>,
    return
  }
  func.func @transform_0(%arg0: i32) -> (i32, i32) {
    %c0_i32 = arith.constant 0 : i32
    %c0_i32_0 = arith.constant 0 : i32
    %c0_i32_1 = arith.constant 0 : i32
    return %c0_i32, %c0_i32_0 : i32, i32
  }
  func.func @transform_1(%arg0: i32) -> (i32, i32) {
    %c0_i32 = arith.constant 0 : i32
    %c0_i32_0 = arith.constant 0 : i32
    %c0_i32_1 = arith.constant 0 : i32
    return %c0_i32, %c0_i32_0 : i32, i32
  }
  func.func @transform_2(%arg0: i32) -> (i32, i32) {
    %c0_i32 = arith.constant 0 : i32
    %c0_i32_0 = arith.constant 0 : i32
    %c0_i32_1 = arith.constant 0 : i32
    return %c0_i32, %c0_i32_0 : i32, i32
  }
  func.func @transform_3(%arg0: i32) -> (i32, i32) {
    %c0_i32 = arith.constant 0 : i32
    %c0_i32_0 = arith.constant 0 : i32
    %c0_i32_1 = arith.constant 0 : i32
    return %c0_i32, %c0_i32_0 : i32, i32
  }
  func.func @transform_4(%arg0: i32) -> (i32, i32, i32) {
    %c0_i32 = arith.constant 0 : i32
    %c0_i32_0 = arith.constant 0 : i32
    %c0_i32_1 = arith.constant 0 : i32
    %c0_i32_2 = arith.constant 0 : i32
    return %c0_i32, %c0_i32_0, %c0_i32_1 : i32, i32, i32
  }
  func.func @transform_5(%arg0: i32) -> (i32, i32) {
    %c0_i32 = arith.constant 0 : i32
    %c0_i32_0 = arith.constant 0 : i32
    %c0_i32_1 = arith.constant 0 : i32
    return %c0_i32, %c0_i32_0 : i32, i32
  }
  func.func @transform_6(%arg0: i32) -> (i32, i32) {
    %c0_i32 = arith.constant 0 : i32
    %c0_i32_0 = arith.constant 0 : i32
    %c0_i32_1 = arith.constant 0 : i32
    return %c0_i32, %c0_i32_0 : i32, i32
  }
  func.func @transform_7(%arg0: i32) -> (i32, i32) {
    %c0_i32 = arith.constant 0 : i32
    %c0_i32_0 = arith.constant 0 : i32
    %c0_i32_1 = arith.constant 0 : i32
    return %c0_i32, %c0_i32_0 : i32, i32
  }
}

</mosaic_0001>

<llo_original>
// kernel: tpu_custom_call.1
$region0: #{tpu_custom_call.1}
  #allocation0 [shape = 'u32[]', space=smem, size = 0x4, offset = 0x4, fixed_abs, tag = 'smem constant byte address 0x4 - core index']
  #allocation1 [shape = 'u32[72,128]{1,0:T(1,128)}', space=vmem, size = 0x9000, scoped, tag = 'internal scratch']
  %s0 = inlined_call_operand.vmem [shape: bf16[128,64], index: 0, kind: input, shape index: {}]
  %s1 = inlined_call_operand.vmem [shape: bf16[64,128], index: 1, kind: input, shape index: {}]
  %s2 = inlined_call_operand.vmem [shape: f32[1,128], index: 2, kind: input, shape index: {}]
  %s3 = inlined_call_operand.vmem [shape: bf16[128,128], index: 3, kind: input, shape index: {}]
  %s4 = inlined_call_operand.hbm [shape: bf16[4,128,128], index: 4, kind: input, shape index: {}]
  %s5 = inlined_call_operand.hbm [shape: bf16[128,128], index: 5, kind: input, shape index: {}]
  %s6 = inlined_call_operand.vmem [shape: f32[1,128], index: 6, kind: input, shape index: {}]
  %s7 = inlined_call_operand.hbm [shape: f32[128,128], index: 7, kind: output, shape index: {}]
  %s8 = sld [smem:[#allocation0]]
  $region46: #{tpu_custom_call.1} parent=0
    _
  %s10 = ssub.s32 1, %s8
  %s11 = scalar_select 0, %s10, %s8
  $region1: #{tpu_custom_call.1} parent=0
    #allocation2 [shape = 'u8[131072]{0}', space=vmem, size = 0x20000, scoped, tag = 'input window, operand 4, single buffered']
    #allocation3 [shape = 's32[1]{0}', space=sflag, size = 0x4, scoped, tag = 'scoped memory for tpu_custom_call.1']
    #allocation4 [shape = 's32[1]{0}', space=sflag, size = 0x4, scoped, tag = 'scoped memory for tpu_custom_call.1']
    #allocation5 [shape = 'u8[32768]{0}', space=vmem, size = 0x8000, scoped, tag = 'input window, operand 5, single buffered']
    #allocation6 [shape = 's32[1]{0}', space=sflag, size = 0x4, scoped, tag = 'scoped memory for tpu_custom_call.1']
    #allocation7 [shape = 'u8[65536]{0}', space=vmem, size = 0x10000, scoped, tag = 'output window, operand 0, single buffered']
    %12 = vsyncpa [#allocation3], 0
    %13 = vsyncpa [#allocation6], 0
    %14 = vsyncpa [#allocation4], 0
    // Predicated region
    $region2: #{tpu_custom_call.1} parent=1 // pred_check
      _
    $region3: #{tpu_custom_call.1} parent=1 // pred_check_branch
      %16 = sbr.rel (0) target = $region5
    $region4: #{tpu_custom_call.1} parent=1 // pred_region
      _
    $region5: #{tpu_custom_call.1} parent=1 // pred_fallthru
      _
    // Predicated region
    $region6: #{tpu_custom_call.1} parent=1 // pred_check
      _
    $region7: #{tpu_custom_call.1} parent=1 // pred_check_branch
      %18 = sbr.rel (0) target = $region9
    $region8: #{tpu_custom_call.1} parent=1 // pred_region
      _
    $region9: #{tpu_custom_call.1} parent=1 // pred_fallthru
      _
    // Predicated region
    $region10: #{tpu_custom_call.1} parent=1 // pred_check
      _
    $region11: #{tpu_custom_call.1} parent=1 // pred_check_branch
      %20 = sbr.rel (0) target = $region13
    $region12: #{tpu_custom_call.1} parent=1 // pred_region
      _
    $region13: #{tpu_custom_call.1} parent=1 // pred_fallthru
      _
    // Predicated region
    $region14: #{tpu_custom_call.1} parent=1 // pred_check
      _
    $region15: #{tpu_custom_call.1} parent=1 // pred_check_branch
      %22 = sbr.rel (0) target = $region17
    $region16: #{tpu_custom_call.1} parent=1 // pred_region
      _
    $region17: #{tpu_custom_call.1} parent=1 // pred_fallthru
      _
    // Predicated region
    $region18: #{tpu_custom_call.1} parent=1 // pred_check
      _
    $region19: #{tpu_custom_call.1} parent=1 // pred_check_branch
      %24 = sbr.rel (0) target = $region21
    $region20: #{tpu_custom_call.1} parent=1 // pred_region
      %26 = vsyncadd [#allocation3], 0
      %s27 = sshll.u32 %s4, 4
      %s28 = int_to_ptr.hbm [resolvable:$true] %s27
      %s29 = sshll.u32 [#allocation2], 4
      %s30 = int_to_ptr.vmem [resolvable:$true] %s29
      %35 = dma.hbm_to_vmem [thread:$0]  %s28, 4096, %s30, [#allocation3], 64, 64, 4
    $region21: #{tpu_custom_call.1} parent=1 // pred_fallthru
      _
    // Predicated region
    $region22: #{tpu_custom_call.1} parent=1 // pred_check
      _
    $region23: #{tpu_custom_call.1} parent=1 // pred_check_branch
      %37 = sbr.rel (0) target = $region25
    $region24: #{tpu_custom_call.1} parent=1 // pred_region
      %39 = vsyncadd [#allocation6], 0
      %s40 = sshll.u32 %s5, 4
      %s41 = int_to_ptr.hbm [resolvable:$true] %s40
      %s42 = sshll.u32 [#allocation5], 4
      %s43 = int_to_ptr.vmem [resolvable:$true] %s42
      %48 = dma.hbm_to_vmem [thread:$0]  %s41, 1024, %s43, [#allocation6], 64, 64, 4
    $region25: #{tpu_custom_call.1} parent=1 // pred_fallthru
      _
    // Predicated region
    $region26: #{tpu_custom_call.1} parent=1 // pred_check
      _
    $region27: #{tpu_custom_call.1} parent=1 // pred_check_branch
      %50 = sbr.rel (0) target = $region29
    $region28: #{tpu_custom_call.1} parent=1 // pred_region
      _
    $region29: #{tpu_custom_call.1} parent=1 // pred_fallthru
      _
    // Predicated region
    $region30: #{tpu_custom_call.1} parent=1 // pred_check
      _
    $region31: #{tpu_custom_call.1} parent=1 // pred_check_branch
      %52 = sbr.rel (0) target = $region33
    $region32: #{tpu_custom_call.1} parent=1 // pred_region
      %54 = dma.done [#allocation3], 4096
    $region33: #{tpu_custom_call.1} parent=1 // pred_fallthru
      _
    // Predicated region
    $region34: #{tpu_custom_call.1} parent=1 // pred_check
      _
    $region35: #{tpu_custom_call.1} parent=1 // pred_check_branch
      %56 = sbr.rel (0) target = $region37
    $region36: #{tpu_custom_call.1} parent=1 // pred_region
      %58 = dma.done [#allocation6], 1024
    $region37: #{tpu_custom_call.1} parent=1 // pred_fallthru
      _
    %v60 = vld [vmem:[%s0] sm:$0xf]
    %v61 = vld [vmem:[%s0 + $0x4] sm:$0xf]
    %v62 = vld [vmem:[%s0 + $0x8] sm:$0xf]
    %v63 = vld [vmem:[%s0 + $0xc] sm:$0xf]
    %v64 = vld [vmem:[%s0 + $0x10] sm:$0xf]
    %v65 = vld [vmem:[%s0 + $0x14] sm:$0xf]
    %v66 = vld [vmem:[%s0 + $0x18] sm:$0xf]
    %v67 = vld [vmem:[%s0 + $0x1c] sm:$0xf]
    %v68 = vld [vmem:[%s0 + $0x20] sm:$0xf]
    %v69 = vld [vmem:[%s0 + $0x24] sm:$0xf]
    %v70 = vld [vmem:[%s0 + $0x28] sm:$0xf]
    %v71 = vld [vmem:[%s0 + $0x2c] sm:$0xf]
    %v72 = vld [vmem:[%s0 + $0x30] sm:$0xf]
    %v73 = vld [vmem:[%s0 + $0x34] sm:$0xf]
    %v74 = vld [vmem:[%s0 + $0x38] sm:$0xf]
    %v75 = vld [vmem:[%s0 + $0x3c] sm:$0xf]
    %v76 = vld [vmem:[%s1] sm:$0xf]
    %v77 = vld [vmem:[%s1 + $0x4] sm:$0xf]
    %v78 = vld [vmem:[%s1 + $0x8] sm:$0xf]
    %v79 = vld [vmem:[%s1 + $0xc] sm:$0xf]
    %v80 = vld [vmem:[%s1 + $0x10] sm:$0xf]
    %v81 = vld [vmem:[%s1 + $0x14] sm:$0xf]
    %v82 = vld [vmem:[%s1 + $0x18] sm:$0xf]
    %v83 = vld [vmem:[%s1 + $0x1c] sm:$0xf]
    %v84 = vld [vmem:[%s2] sm:$0x1]
    %v86 = vperm.slane %v84, 0
    %v104 = vunpack.c.l.b16 %v60
    %v105 = vunpack.c.l.b16 %v61
    %v106 = vunpack.c.l.b16 %v62
    %v107 = vunpack.c.l.b16 %v63
    %v108 = vunpack.c.l.b16 %v64
    %v109 = vunpack.c.l.b16 %v65
    %v110 = vunpack.c.l.b16 %v66
    %v111 = vunpack.c.l.b16 %v67
    %v112 = vunpack.c.l.b16 %v68
    %v113 = vunpack.c.l.b16 %v69
    %v114 = vunpack.c.l.b16 %v70
    %v115 = vunpack.c.l.b16 %v71
    %v116 = vunpack.c.l.b16 %v72
    %v117 = vunpack.c.l.b16 %v73
    %v118 = vunpack.c.l.b16 %v74
    %v119 = vunpack.c.l.b16 %v75
    %v120 = vpack.c.b16 %v105, %v104
    %v121 = vpack.c.b16 %v107, %v106
    %v122 = vpack.c.b16 %v109, %v108
    %v123 = vpack.c.b16 %v111, %v110
    %v124 = vpack.c.b16 %v113, %v112
    %v125 = vpack.c.b16 %v115, %v114
    %v126 = vpack.c.b16 %v117, %v116
    %v127 = vpack.c.b16 %v119, %v118
    %v136 = vunpack.c.l.b16 %v76
    %v137 = vunpack.c.l.b16 %v77
    %v138 = vunpack.c.l.b16 %v78
    %v139 = vunpack.c.l.b16 %v79
    %v140 = vunpack.c.l.b16 %v80
    %v141 = vunpack.c.l.b16 %v81
    %v142 = vunpack.c.l.b16 %v82
    %v143 = vunpack.c.l.b16 %v83
    %v144 = vpack.c.b16 %v137, %v136
    %v145 = vpack.c.b16 %v139, %v138
    %v146 = vpack.c.b16 %v141, %v140
    %v147 = vpack.c.b16 %v143, %v142
    %vm152 = vcmask 523264
    %v154 = vsel %vm152, %v120, 0
    %v157 = vsel %vm152, %v121, 0
    %v160 = vsel %vm152, %v122, 0
    %v163 = vsel %vm152, %v123, 0
    %v166 = vsel %vm152, %v124, 0
    %v169 = vsel %vm152, %v125, 0
    %v172 = vsel %vm152, %v126, 0
    %v175 = vsel %vm152, %v127, 0
    %177 = vmatpush.bf16.msra.mxu0 0
    %178 = vmatpush.bf16.msra.mxu0 0
    %179 = vmatpush.bf16.msra.mxu0 0
    %180 = vmatpush.bf16.msra.mxu0 0
    %181 = vmatpush.bf16.msra.mxu0 %v147
    %182 = vmatpush.bf16.msra.mxu0 %v146
    %183 = vmatpush.bf16.msra.mxu0 %v145
    %184 = vmatpush.bf16.msra.mxu0 %v144
    %185 = vmatmul.bf16.gmra.mxu0 %v154
    %v186 = vpop.f32.mrf.mxu0
    %v187 = vadd.f32 %v86, %v186
    %v188 = vpop.f32.mrf.mxu0
    %v189 = vadd.f32 %v86, %v188
    %190 = vmatmul.bf16.gmra.mxu0 %v157
    %v191 = vpop.f32.mrf.mxu0
    %v192 = vadd.f32 %v86, %v191
    %v193 = vpop.f32.mrf.mxu0
    %v194 = vadd.f32 %v86, %v193
    %195 = vmatmul.bf16.gmra.mxu0 %v160
    %v196 = vpop.f32.mrf.mxu0
    %v197 = vadd.f32 %v86, %v196
    %v198 = vpop.f32.mrf.mxu0
    %v199 = vadd.f32 %v86, %v198
    %200 = vmatmul.bf16.gmra.mxu0 %v163
    %v201 = vpop.f32.mrf.mxu0
    %v202 = vadd.f32 %v86, %v201
    %v203 = vpop.f32.mrf.mxu0
    %v204 = vadd.f32 %v86, %v203
    %205 = vmatmul.bf16.gmra.mxu0 %v166
    %v206 = vpop.f32.mrf.mxu0
    %v207 = vadd.f32 %v86, %v206
    %v208 = vpop.f32.mrf.mxu0
    %v209 = vadd.f32 %v86, %v208
    %210 = vmatmul.bf16.gmra.mxu0 %v169
    %v211 = vpop.f32.mrf.mxu0
    %v212 = vadd.f32 %v86, %v211
    %v213 = vpop.f32.mrf.mxu0
    %v214 = vadd.f32 %v86, %v213
    %215 = vmatmul.bf16.gmra.mxu0 %v172
    %v216 = vpop.f32.mrf.mxu0
    %v217 = vadd.f32 %v86, %v216
    %v218 = vpop.f32.mrf.mxu0
    %v219 = vadd.f32 %v86, %v218
    %220 = vmatmul.bf16.gmra.mxu0 %v175
    %v221 = vpop.f32.mrf.mxu0
    %v222 = vadd.f32 %v86, %v221
    %v223 = vpop.f32.mrf.mxu0
    %v224 = vadd.f32 %v86, %v223
    %225 = vdwg.mxu0
    %v226 = vmax.f32 %v187, 0.0
    %v227 = vmax.f32 %v189, 0.0
    %v228 = vmax.f32 %v192, 0.0
    %v229 = vmax.f32 %v194, 0.0
    %v230 = vmax.f32 %v197, 0.0
    %v231 = vmax.f32 %v199, 0.0
    %v232 = vmax.f32 %v202, 0.0
    %v233 = vmax.f32 %v204, 0.0
    %v234 = vmax.f32 %v207, 0.0
    %v235 = vmax.f32 %v209, 0.0
    %v236 = vmax.f32 %v212, 0.0
    %v237 = vmax.f32 %v214, 0.0
    %v238 = vmax.f32 %v217, 0.0
    %v239 = vmax.f32 %v219, 0.0
    %v240 = vmax.f32 %v222, 0.0
    %v241 = vmax.f32 %v224, 0.0
    %v242 = vmul.f32 %v226, 0.1
    %v243 = vmul.f32 %v227, 0.1
    %v244 = vmul.f32 %v228, 0.1
    %v245 = vmul.f32 %v229, 0.1
    %v246 = vmul.f32 %v230, 0.1
    %v247 = vmul.f32 %v231, 0.1
    %v248 = vmul.f32 %v232, 0.1
    %v249 = vmul.f32 %v233, 0.1
    %v250 = vmul.f32 %v234, 0.1
    %v251 = vmul.f32 %v235, 0.1
    %v252 = vmul.f32 %v236, 0.1
    %v253 = vmul.f32 %v237, 0.1
    %v254 = vmul.f32 %v238, 0.1
    %v255 = vmul.f32 %v239, 0.1
    %v256 = vmul.f32 %v240, 0.1
    %v257 = vmul.f32 %v241, 0.1
    %v258 = vld [vmem:[%s3] sm:$0xf]
    %v259 = vld [vmem:[%s3 + $0x4] sm:$0xf]
    %v260 = vld [vmem:[%s3 + $0x8] sm:$0xf]
    %v261 = vld [vmem:[%s3 + $0xc] sm:$0xf]
    %v262 = vld [vmem:[%s3 + $0x10] sm:$0xf]
    %v263 = vld [vmem:[%s3 + $0x14] sm:$0xf]
    %v264 = vld [vmem:[%s3 + $0x18] sm:$0xf]
    %v265 = vld [vmem:[%s3 + $0x1c] sm:$0xf]
    %v266 = vld [vmem:[%s3 + $0x20] sm:$0xf]
    %v267 = vld [vmem:[%s3 + $0x24] sm:$0xf]
    %v268 = vld [vmem:[%s3 + $0x28] sm:$0xf]
    %v269 = vld [vmem:[%s3 + $0x2c] sm:$0xf]
    %v270 = vld [vmem:[%s3 + $0x30] sm:$0xf]
    %v271 = vld [vmem:[%s3 + $0x34] sm:$0xf]
    %v272 = vld [vmem:[%s3 + $0x38] sm:$0xf]
    %v273 = vld [vmem:[%s3 + $0x3c] sm:$0xf]
    %v274 = vpack.c.bf16 %v227, %v226
    %v275 = vpack.c.bf16 %v229, %v228
    %v276 = vpack.c.bf16 %v231, %v230
    %v277 = vpack.c.bf16 %v233, %v232
    %v278 = vpack.c.bf16 %v235, %v234
    %v279 = vpack.c.bf16 %v237, %v236
    %v280 = vpack.c.bf16 %v239, %v238
    %v281 = vpack.c.bf16 %v241, %v240
    %v298 = vunpack.c.l.b16 %v258
    %v299 = vunpack.c.l.b16 %v259
    %v300 = vunpack.c.l.b16 %v260
    %v301 = vunpack.c.l.b16 %v261
    %v302 = vunpack.c.l.b16 %v262
    %v303 = vunpack.c.l.b16 %v263
    %v304 = vunpack.c.l.b16 %v264
    %v305 = vunpack.c.l.b16 %v265
    %v306 = vunpack.c.l.b16 %v266
    %v307 = vunpack.c.l.b16 %v267
    %v308 = vunpack.c.l.b16 %v268
    %v309 = vunpack.c.l.b16 %v269
    %v310 = vunpack.c.l.b16 %v270
    %v311 = vunpack.c.l.b16 %v271
    %v312 = vunpack.c.l.b16 %v272
    %v313 = vunpack.c.l.b16 %v273
    %v314 = vpack.c.b16 %v299, %v298
    %v315 = vpack.c.b16 %v301, %v300
    %v316 = vpack.c.b16 %v303, %v302
    %v317 = vpack.c.b16 %v305, %v304
    %v318 = vpack.c.b16 %v307, %v306
    %v319 = vpack.c.b16 %v309, %v308
    %v320 = vpack.c.b16 %v311, %v310
    %v321 = vpack.c.b16 %v313, %v312
    %330 = vmatpush.bf16.msra.mxu0 %v281
    %331 = vmatpush.bf16.msra.mxu0 %v280
    %332 = vmatpush.bf16.msra.mxu0 %v279
    %333 = vmatpush.bf16.msra.mxu0 %v278
    %334 = vmatpush.bf16.msra.mxu0 %v277
    %335 = vmatpush.bf16.msra.mxu0 %v276
    %336 = vmatpush.bf16.msra.mxu0 %v275
    %337 = vmatpush.bf16.msra.mxu0 %v274
    %338 = vmatmul.bf16.gmra.mxu0 %v314
    %v339 = vpop.f32.mrf.mxu0
    %v340 = vadd.f32 %v242, %v339
    %v341 = vpop.f32.mrf.mxu0
    %v342 = vadd.f32 %v243, %v341
    %343 = vmatmul.bf16.gmra.mxu0 %v315
    %v344 = vpop.f32.mrf.mxu0
    %v345 = vadd.f32 %v244, %v344
    %v346 = vpop.f32.mrf.mxu0
    %v347 = vadd.f32 %v245, %v346
    %348 = vmatmul.bf16.gmra.mxu0 %v316
    %v349 = vpop.f32.mrf.mxu0
    %v350 = vadd.f32 %v246, %v349
    %v351 = vpop.f32.mrf.mxu0
    %v352 = vadd.f32 %v247, %v351
    %353 = vmatmul.bf16.gmra.mxu0 %v317
    %v354 = vpop.f32.mrf.mxu0
    %v355 = vadd.f32 %v248, %v354
    %v356 = vpop.f32.mrf.mxu0
    %v357 = vadd.f32 %v249, %v356
    %358 = vmatmul.bf16.gmra.mxu0 %v318
    %v359 = vpop.f32.mrf.mxu0
    %v360 = vadd.f32 %v250, %v359
    %v361 = vpop.f32.mrf.mxu0
    %v362 = vadd.f32 %v251, %v361
    %363 = vmatmul.bf16.gmra.mxu0 %v319
    %v364 = vpop.f32.mrf.mxu0
    %v365 = vadd.f32 %v252, %v364
    %v366 = vpop.f32.mrf.mxu0
    %v367 = vadd.f32 %v253, %v366
    %368 = vmatmul.bf16.gmra.mxu0 %v320
    %v369 = vpop.f32.mrf.mxu0
    %v370 = vadd.f32 %v254, %v369
    %v371 = vpop.f32.mrf.mxu0
    %v372 = vadd.f32 %v255, %v371
    %373 = vmatmul.bf16.gmra.mxu0 %v321
    %v374 = vpop.f32.mrf.mxu0
    %v375 = vadd.f32 %v256, %v374
    %v376 = vpop.f32.mrf.mxu0
    %v377 = vadd.f32 %v257, %v376
    %378 = vdwg.mxu0
    %v379 = vpack.c.bf16 %v342, %v340
    %v380 = vpack.c.bf16 %v347, %v345
    %v381 = vpack.c.bf16 %v352, %v350
    %v382 = vpack.c.bf16 %v357, %v355
    %v383 = vpack.c.bf16 %v362, %v360
    %v384 = vpack.c.bf16 %v367, %v365
    %v385 = vpack.c.bf16 %v372, %v370
    %v386 = vpack.c.bf16 %v377, %v375
    %v387 = vld [vmem:[#allocation2] sm:$0xf]
    %v388 = vld [vmem:[#allocation2 + $0x4] sm:$0xf]
    %v389 = vld [vmem:[#allocation2 + $0x8] sm:$0xf]
    %v390 = vld [vmem:[#allocation2 + $0xc] sm:$0xf]
    %v391 = vld [vmem:[#allocation2 + $0x10] sm:$0xf]
    %v392 = vld [vmem:[#allocation2 + $0x14] sm:$0xf]
    %v393 = vld [vmem:[#allocation2 + $0x18] sm:$0xf]
    %v394 = vld [vmem:[#allocation2 + $0x1c] sm:$0xf]
    %v395 = vld [vmem:[#allocation2 + $0x20] sm:$0xf]
    %v396 = vld [vmem:[#allocation2 + $0x24] sm:$0xf]
    %v397 = vld [vmem:[#allocation2 + $0x28] sm:$0xf]
    %v398 = vld [vmem:[#allocation2 + $0x2c] sm:$0xf]
    %v399 = vld [vmem:[#allocation2 + $0x30] sm:$0xf]
    %v400 = vld [vmem:[#allocation2 + $0x34] sm:$0xf]
    %v401 = vld [vmem:[#allocation2 + $0x38] sm:$0xf]
    %v402 = vld [vmem:[#allocation2 + $0x3c] sm:$0xf]
    %v419 = vunpack.c.l.b16 %v387
    %v420 = vunpack.c.l.b16 %v388
    %v421 = vunpack.c.l.b16 %v389
    %v422 = vunpack.c.l.b16 %v390
    %v423 = vunpack.c.l.b16 %v391
    %v424 = vunpack.c.l.b16 %v392
    %v425 = vunpack.c.l.b16 %v393
    %v426 = vunpack.c.l.b16 %v394
    %v427 = vunpack.c.l.b16 %v395
    %v428 = vunpack.c.l.b16 %v396
    %v429 = vunpack.c.l.b16 %v397
    %v430 = vunpack.c.l.b16 %v398
    %v431 = vunpack.c.l.b16 %v399
    %v432 = vunpack.c.l.b16 %v400
    %v433 = vunpack.c.l.b16 %v401
    %v434 = vunpack.c.l.b16 %v402
    %v435 = vpack.c.b16 %v420, %v419
    %v436 = vpack.c.b16 %v422, %v421
    %v437 = vpack.c.b16 %v424, %v423
    %v438 = vpack.c.b16 %v426, %v425
    %v439 = vpack.c.b16 %v428, %v427
    %v440 = vpack.c.b16 %v430, %v429
    %v441 = vpack.c.b16 %v432, %v431
    %v442 = vpack.c.b16 %v434, %v433
    %451 = vmatpush.bf16.msra.mxu0 %v442
    %452 = vmatpush.bf16.msra.mxu0 %v441
    %453 = vmatpush.bf16.msra.mxu0 %v440
    %454 = vmatpush.bf16.msra.mxu0 %v439
    %455 = vmatpush.bf16.msra.mxu0 %v438
    %456 = vmatpush.bf16.msra.mxu0 %v437
    %457 = vmatpush.bf16.msra.mxu0 %v436
    %458 = vmatpush.bf16.msra.mxu0 %v435
    %459 = vmatmul.bf16.gmra.mxu0 %v379
    %v460 = vpop.f32.mrf.mxu0
    %v461 = vadd.f32 0.0, %v460
    %v462 = vpop.f32.mrf.mxu0
    %v463 = vadd.f32 0.0, %v462
    %464 = vmatmul.bf16.gmra.mxu0 %v380
    %v465 = vpop.f32.mrf.mxu0
    %v466 = vadd.f32 0.0, %v465
    %v467 = vpop.f32.mrf.mxu0
    %v468 = vadd.f32 0.0, %v467
    %469 = vmatmul.bf16.gmra.mxu0 %v381
    %v470 = vpop.f32.mrf.mxu0
    %v471 = vadd.f32 0.0, %v470
    %v472 = vpop.f32.mrf.mxu0
    %v473 = vadd.f32 0.0, %v472
    %474 = vmatmul.bf16.gmra.mxu0 %v382
    %v475 = vpop.f32.mrf.mxu0
    %v476 = vadd.f32 0.0, %v475
    %v477 = vpop.f32.mrf.mxu0
    %v478 = vadd.f32 0.0, %v477
    %479 = vmatmul.bf16.gmra.mxu0 %v383
    %v480 = vpop.f32.mrf.mxu0
    %v481 = vadd.f32 0.0, %v480
    %v482 = vpop.f32.mrf.mxu0
    %v483 = vadd.f32 0.0, %v482
    %484 = vmatmul.bf16.gmra.mxu0 %v384
    %v485 = vpop.f32.mrf.mxu0
    %v486 = vadd.f32 0.0, %v485
    %v487 = vpop.f32.mrf.mxu0
    %v488 = vadd.f32 0.0, %v487
    %489 = vmatmul.bf16.gmra.mxu0 %v385
    %v490 = vpop.f32.mrf.mxu0
    %v491 = vadd.f32 0.0, %v490
    %v492 = vpop.f32.mrf.mxu0
    %v493 = vadd.f32 0.0, %v492
    %494 = vmatmul.bf16.gmra.mxu0 %v386
    %v495 = vpop.f32.mrf.mxu0
    %v496 = vadd.f32 0.0, %v495
    %v497 = vpop.f32.mrf.mxu0
    %v498 = vadd.f32 0.0, %v497
    %499 = vdwg.mxu0
    %v500 = vmax.f32 %v461, 0.0
    %v501 = vmax.f32 %v463, 0.0
    %v502 = vmax.f32 %v466, 0.0
    %v503 = vmax.f32 %v468, 0.0
    %v504 = vmax.f32 %v471, 0.0
    %v505 = vmax.f32 %v473, 0.0
    %v506 = vmax.f32 %v476, 0.0
    %v507 = vmax.f32 %v478, 0.0
    %v508 = vmax.f32 %v481, 0.0
    %v509 = vmax.f32 %v483, 0.0
    %v510 = vmax.f32 %v486, 0.0
    %v511 = vmax.f32 %v488, 0.0
    %v512 = vmax.f32 %v491, 0.0
    %v513 = vmax.f32 %v493, 0.0
    %v514 = vmax.f32 %v496, 0.0
    %v515 = vmax.f32 %v498, 0.0
    %v516 = vpack.c.bf16 %v501, %v500
    %v517 = vpack.c.bf16 %v503, %v502
    %v518 = vpack.c.bf16 %v505, %v504
    %v519 = vpack.c.bf16 %v507, %v506
    %v520 = vpack.c.bf16 %v509, %v508
    %v521 = vpack.c.bf16 %v511, %v510
    %v522 = vpack.c.bf16 %v513, %v512
    %v523 = vpack.c.bf16 %v515, %v514
    %524 = vmatpush.bf16.msra.mxu0 %v523
    %525 = vmatpush.bf16.msra.mxu0 %v522
    %526 = vmatpush.bf16.msra.mxu0 %v521
    %527 = vmatpush.bf16.msra.mxu0 %v520
    %528 = vmatpush.bf16.msra.mxu0 %v519
    %529 = vmatpush.bf16.msra.mxu0 %v518
    %530 = vmatpush.bf16.msra.mxu0 %v517
    %531 = vmatpush.bf16.msra.mxu0 %v516
    %532 = vmatmul.bf16.gmra.mxu0 %v314
    %v533 = vpop.f32.mrf.mxu0
    %v534 = vadd.f32 %v242, %v533
    %v535 = vpop.f32.mrf.mxu0
    %v536 = vadd.f32 %v243, %v535
    %537 = vmatmul.bf16.gmra.mxu0 %v315
    %v538 = vpop.f32.mrf.mxu0
    %v539 = vadd.f32 %v244, %v538
    %v540 = vpop.f32.mrf.mxu0
    %v541 = vadd.f32 %v245, %v540
    %542 = vmatmul.bf16.gmra.mxu0 %v316
    %v543 = vpop.f32.mrf.mxu0
    %v544 = vadd.f32 %v246, %v543
    %v545 = vpop.f32.mrf.mxu0
    %v546 = vadd.f32 %v247, %v545
    %547 = vmatmul.bf16.gmra.mxu0 %v317
    %v548 = vpop.f32.mrf.mxu0
    %v549 = vadd.f32 %v248, %v548
    %v550 = vpop.f32.mrf.mxu0
    %v551 = vadd.f32 %v249, %v550
    %552 = vmatmul.bf16.gmra.mxu0 %v318
    %v553 = vpop.f32.mrf.mxu0
    %v554 = vadd.f32 %v250, %v553
    %v555 = vpop.f32.mrf.mxu0
    %v556 = vadd.f32 %v251, %v555
    %557 = vmatmul.bf16.gmra.mxu0 %v319
    %v558 = vpop.f32.mrf.mxu0
    %v559 = vadd.f32 %v252, %v558
    %v560 = vpop.f32.mrf.mxu0
    %v561 = vadd.f32 %v253, %v560
    %562 = vmatmul.bf16.gmra.mxu0 %v320
    %v563 = vpop.f32.mrf.mxu0
    %v564 = vadd.f32 %v254, %v563
    %v565 = vpop.f32.mrf.mxu0
    %v566 = vadd.f32 %v255, %v565
    %567 = vmatmul.bf16.gmra.mxu0 %v321
    %v568 = vpop.f32.mrf.mxu0
    %v569 = vadd.f32 %v256, %v568
    %v570 = vpop.f32.mrf.mxu0
    %v571 = vadd.f32 %v257, %v570
    %572 = vdwg.mxu0
    %v573 = vpack.c.bf16 %v536, %v534
    %v574 = vpack.c.bf16 %v541, %v539
    %v575 = vpack.c.bf16 %v546, %v544
    %v576 = vpack.c.bf16 %v551, %v549
    %v577 = vpack.c.bf16 %v556, %v554
    %v578 = vpack.c.bf16 %v561, %v559
    %v579 = vpack.c.bf16 %v566, %v564
    %v580 = vpack.c.bf16 %v571, %v569
    %s581 = scalar_lea.vmem [#allocation2], 64
    %v582 = vld [vmem:[%s581] sm:$0xf]
    %v583 = vld [vmem:[%s581 + $0x4] sm:$0xf]
    %v584 = vld [vmem:[%s581 + $0x8] sm:$0xf]
    %v585 = vld [vmem:[%s581 + $0xc] sm:$0xf]
    %v586 = vld [vmem:[%s581 + $0x10] sm:$0xf]
    %v587 = vld [vmem:[%s581 + $0x14] sm:$0xf]
    %v588 = vld [vmem:[%s581 + $0x18] sm:$0xf]
    %v589 = vld [vmem:[%s581 + $0x1c] sm:$0xf]
    %v590 = vld [vmem:[%s581 + $0x20] sm:$0xf]
    %v591 = vld [vmem:[%s581 + $0x24] sm:$0xf]
    %v592 = vld [vmem:[%s581 + $0x28] sm:$0xf]
    %v593 = vld [vmem:[%s581 + $0x2c] sm:$0xf]
    %v594 = vld [vmem:[%s581 + $0x30] sm:$0xf]
    %v595 = vld [vmem:[%s581 + $0x34] sm:$0xf]
    %v596 = vld [vmem:[%s581 + $0x38] sm:$0xf]
    %v597 = vld [vmem:[%s581 + $0x3c] sm:$0xf]
    %v614 = vunpack.c.l.b16 %v582
    %v615 = vunpack.c.l.b16 %v583
    %v616 = vunpack.c.l.b16 %v584
    %v617 = vunpack.c.l.b16 %v585
    %v618 = vunpack.c.l.b16 %v586
    %v619 = vunpack.c.l.b16 %v587
    %v620 = vunpack.c.l.b16 %v588
    %v621 = vunpack.c.l.b16 %v589
    %v622 = vunpack.c.l.b16 %v590
    %v623 = vunpack.c.l.b16 %v591
    %v624 = vunpack.c.l.b16 %v592
    %v625 = vunpack.c.l.b16 %v593
    %v626 = vunpack.c.l.b16 %v594
    %v627 = vunpack.c.l.b16 %v595
    %v628 = vunpack.c.l.b16 %v596
    %v629 = vunpack.c.l.b16 %v597
    %v630 = vpack.c.b16 %v615, %v614
    %v631 = vpack.c.b16 %v617, %v616
    %v632 = vpack.c.b16 %v619, %v618
    %v633 = vpack.c.b16 %v621, %v620
    %v634 = vpack.c.b16 %v623, %v622
    %v635 = vpack.c.b16 %v625, %v624
    %v636 = vpack.c.b16 %v627, %v626
    %v637 = vpack.c.b16 %v629, %v628
    %646 = vmatpush.bf16.msra.mxu0 %v637
    %647 = vmatpush.bf16.msra.mxu0 %v636
    %648 = vmatpush.bf16.msra.mxu0 %v635
    %649 = vmatpush.bf16.msra.mxu0 %v634
    %650 = vmatpush.bf16.msra.mxu0 %v633
    %651 = vmatpush.bf16.msra.mxu0 %v632
    %652 = vmatpush.bf16.msra.mxu0 %v631
    %653 = vmatpush.bf16.msra.mxu0 %v630
    %654 = vmatmul.bf16.gmra.mxu0 %v573
    %v655 = vpop.f32.mrf.mxu0
    %v656 = vadd.f32 0.0, %v655
    %v657 = vpop.f32.mrf.mxu0
    %v658 = vadd.f32 0.0, %v657
    %659 = vmatmul.bf16.gmra.mxu0 %v574
    %v660 = vpop.f32.mrf.mxu0
    %v661 = vadd.f32 0.0, %v660
    %v662 = vpop.f32.mrf.mxu0
    %v663 = vadd.f32 0.0, %v662
    %664 = vmatmul.bf16.gmra.mxu0 %v575
    %v665 = vpop.f32.mrf.mxu0
    %v666 = vadd.f32 0.0, %v665
    %v667 = vpop.f32.mrf.mxu0
    %v668 = vadd.f32 0.0, %v667
    %669 = vmatmul.bf16.gmra.mxu0 %v576
    %v670 = vpop.f32.mrf.mxu0
    %v671 = vadd.f32 0.0, %v670
    %v672 = vpop.f32.mrf.mxu0
    %v673 = vadd.f32 0.0, %v672
    %674 = vmatmul.bf16.gmra.mxu0 %v577
    %v675 = vpop.f32.mrf.mxu0
    %v676 = vadd.f32 0.0, %v675
    %v677 = vpop.f32.mrf.mxu0
    %v678 = vadd.f32 0.0, %v677
    %679 = vmatmul.bf16.gmra.mxu0 %v578
    %v680 = vpop.f32.mrf.mxu0
    %v681 = vadd.f32 0.0, %v680
    %v682 = vpop.f32.mrf.mxu0
    %v683 = vadd.f32 0.0, %v682
    %684 = vmatmul.bf16.gmra.mxu0 %v579
    %v685 = vpop.f32.mrf.mxu0
    %v686 = vadd.f32 0.0, %v685
    %v687 = vpop.f32.mrf.mxu0
    %v688 = vadd.f32 0.0, %v687
    %689 = vmatmul.bf16.gmra.mxu0 %v580
    %v690 = vpop.f32.mrf.mxu0
    %v691 = vadd.f32 0.0, %v690
    %v692 = vpop.f32.mrf.mxu0
    %v693 = vadd.f32 0.0, %v692
    %694 = vdwg.mxu0
    %v695 = vmax.f32 %v656, 0.0
    %v696 = vmax.f32 %v658, 0.0
    %v697 = vmax.f32 %v661, 0.0
    %v698 = vmax.f32 %v663, 0.0
    %v699 = vmax.f32 %v666, 0.0
    %v700 = vmax.f32 %v668, 0.0
    %v701 = vmax.f32 %v671, 0.0
    %v702 = vmax.f32 %v673, 0.0
    %v703 = vmax.f32 %v676, 0.0
    %v704 = vmax.f32 %v678, 0.0
    %v705 = vmax.f32 %v681, 0.0
    %v706 = vmax.f32 %v683, 0.0
    %v707 = vmax.f32 %v686, 0.0
    %v708 = vmax.f32 %v688, 0.0
    %v709 = vmax.f32 %v691, 0.0
    %v710 = vmax.f32 %v693, 0.0
    %v711 = vpack.c.bf16 %v696, %v695
    %v712 = vpack.c.bf16 %v698, %v697
    %v713 = vpack.c.bf16 %v700, %v699
    %v714 = vpack.c.bf16 %v702, %v701
    %v715 = vpack.c.bf16 %v704, %v703
    %v716 = vpack.c.bf16 %v706, %v705
    %v717 = vpack.c.bf16 %v708, %v707
    %v718 = vpack.c.bf16 %v710, %v709
    %719 = vmatpush.bf16.msra.mxu0 %v718
    %720 = vmatpush.bf16.msra.mxu0 %v717
    %721 = vmatpush.bf16.msra.mxu0 %v716
    %722 = vmatpush.bf16.msra.mxu0 %v715
    %723 = vmatpush.bf16.msra.mxu0 %v714
    %724 = vmatpush.bf16.msra.mxu0 %v713
    %725 = vmatpush.bf16.msra.mxu0 %v712
    %726 = vmatpush.bf16.msra.mxu0 %v711
    %727 = vmatmul.bf16.gmra.mxu0 %v314
    %v728 = vpop.f32.mrf.mxu0
    %v729 = vadd.f32 %v242, %v728
    %v730 = vpop.f32.mrf.mxu0
    %v731 = vadd.f32 %v243, %v730
    %732 = vmatmul.bf16.gmra.mxu0 %v315
    %v733 = vpop.f32.mrf.mxu0
    %v734 = vadd.f32 %v244, %v733
    %v735 = vpop.f32.mrf.mxu0
    %v736 = vadd.f32 %v245, %v735
    %737 = vmatmul.bf16.gmra.mxu0 %v316
    %v738 = vpop.f32.mrf.mxu0
    %v739 = vadd.f32 %v246, %v738
    %v740 = vpop.f32.mrf.mxu0
    %v741 = vadd.f32 %v247, %v740
    %742 = vmatmul.bf16.gmra.mxu0 %v317
    %v743 = vpop.f32.mrf.mxu0
    %v744 = vadd.f32 %v248, %v743
    %v745 = vpop.f32.mrf.mxu0
    %v746 = vadd.f32 %v249, %v745
    %747 = vmatmul.bf16.gmra.mxu0 %v318
    %v748 = vpop.f32.mrf.mxu0
    %v749 = vadd.f32 %v250, %v748
    %v750 = vpop.f32.mrf.mxu0
    %v751 = vadd.f32 %v251, %v750
    %752 = vmatmul.bf16.gmra.mxu0 %v319
    %v753 = vpop.f32.mrf.mxu0
    %v754 = vadd.f32 %v252, %v753
    %v755 = vpop.f32.mrf.mxu0
    %v756 = vadd.f32 %v253, %v755
    %757 = vmatmul.bf16.gmra.mxu0 %v320
    %v758 = vpop.f32.mrf.mxu0
    %v759 = vadd.f32 %v254, %v758
    %v760 = vpop.f32.mrf.mxu0
    %v761 = vadd.f32 %v255, %v760
    %762 = vmatmul.bf16.gmra.mxu0 %v321
    %v763 = vpop.f32.mrf.mxu0
    %v764 = vadd.f32 %v256, %v763
    %v765 = vpop.f32.mrf.mxu0
    %v766 = vadd.f32 %v257, %v765
    %767 = vdwg.mxu0
    %v768 = vpack.c.bf16 %v731, %v729
    %v769 = vpack.c.bf16 %v736, %v734
    %v770 = vpack.c.bf16 %v741, %v739
    %v771 = vpack.c.bf16 %v746, %v744
    %v772 = vpack.c.bf16 %v751, %v749
    %v773 = vpack.c.bf16 %v756, %v754
    %v774 = vpack.c.bf16 %v761, %v759
    %v775 = vpack.c.bf16 %v766, %v764
    %s776 = scalar_lea.vmem [#allocation2], 128
    %v777 = vld [vmem:[%s776] sm:$0xf]
    %v778 = vld [vmem:[%s776 + $0x4] sm:$0xf]
    %v779 = vld [vmem:[%s776 + $0x8] sm:$0xf]
    %v780 = vld [vmem:[%s776 + $0xc] sm:$0xf]
    %v781 = vld [vmem:[%s776 + $0x10] sm:$0xf]
    %v782 = vld [vmem:[%s776 + $0x14] sm:$0xf]
    %v783 = vld [vmem:[%s776 + $0x18] sm:$0xf]
    %v784 = vld [vmem:[%s776 + $0x1c] sm:$0xf]
    %v785 = vld [vmem:[%s776 + $0x20] sm:$0xf]
    %v786 = vld [vmem:[%s776 + $0x24] sm:$0xf]
    %v787 = vld [vmem:[%s776 + $0x28] sm:$0xf]
    %v788 = vld [vmem:[%s776 + $0x2c] sm:$0xf]
    %v789 = vld [vmem:[%s776 + $0x30] sm:$0xf]
    %v790 = vld [vmem:[%s776 + $0x34] sm:$0xf]
    %v791 = vld [vmem:[%s776 + $0x38] sm:$0xf]
    %v792 = vld [vmem:[%s776 + $0x3c] sm:$0xf]
    %v809 = vunpack.c.l.b16 %v777
    %v810 = vunpack.c.l.b16 %v778
    %v811 = vunpack.c.l.b16 %v779
    %v812 = vunpack.c.l.b16 %v780
    %v813 = vunpack.c.l.b16 %v781
    %v814 = vunpack.c.l.b16 %v782
    %v815 = vunpack.c.l.b16 %v783
    %v816 = vunpack.c.l.b16 %v784
    %v817 = vunpack.c.l.b16 %v785
    %v818 = vunpack.c.l.b16 %v786
    %v819 = vunpack.c.l.b16 %v787
    %v820 = vunpack.c.l.b16 %v788
    %v821 = vunpack.c.l.b16 %v789
    %v822 = vunpack.c.l.b16 %v790
    %v823 = vunpack.c.l.b16 %v791
    %v824 = vunpack.c.l.b16 %v792
    %v825 = vpack.c.b16 %v810, %v809
    %v826 = vpack.c.b16 %v812, %v811
    %v827 = vpack.c.b16 %v814, %v813
    %v828 = vpack.c.b16 %v816, %v815
    %v829 = vpack.c.b16 %v818, %v817
    %v830 = vpack.c.b16 %v820, %v819
    %v831 = vpack.c.b16 %v822, %v821
    %v832 = vpack.c.b16 %v824, %v823
    %841 = vmatpush.bf16.msra.mxu0 %v832
    %842 = vmatpush.bf16.msra.mxu0 %v831
    %843 = vmatpush.bf16.msra.mxu0 %v830
    %844 = vmatpush.bf16.msra.mxu0 %v829
    %845 = vmatpush.bf16.msra.mxu0 %v828
    %846 = vmatpush.bf16.msra.mxu0 %v827
    %847 = vmatpush.bf16.msra.mxu0 %v826
    %848 = vmatpush.bf16.msra.mxu0 %v825
    %849 = vmatmul.bf16.gmra.mxu0 %v768
    %v850 = vpop.f32.mrf.mxu0
    %v851 = vadd.f32 0.0, %v850
    %v852 = vpop.f32.mrf.mxu0
    %v853 = vadd.f32 0.0, %v852
    %854 = vmatmul.bf16.gmra.mxu0 %v769
    %v855 = vpop.f32.mrf.mxu0
    %v856 = vadd.f32 0.0, %v855
    %v857 = vpop.f32.mrf.mxu0
    %v858 = vadd.f32 0.0, %v857
    %859 = vmatmul.bf16.gmra.mxu0 %v770
    %v860 = vpop.f32.mrf.mxu0
    %v861 = vadd.f32 0.0, %v860
    %v862 = vpop.f32.mrf.mxu0
    %v863 = vadd.f32 0.0, %v862
    %864 = vmatmul.bf16.gmra.mxu0 %v771
    %v865 = vpop.f32.mrf.mxu0
    %v866 = vadd.f32 0.0, %v865
    %v867 = vpop.f32.mrf.mxu0
    %v868 = vadd.f32 0.0, %v867
    %869 = vmatmul.bf16.gmra.mxu0 %v772
    %v870 = vpop.f32.mrf.mxu0
    %v871 = vadd.f32 0.0, %v870
    %v872 = vpop.f32.mrf.mxu0
    %v873 = vadd.f32 0.0, %v872
    %874 = vmatmul.bf16.gmra.mxu0 %v773
    %v875 = vpop.f32.mrf.mxu0
    %v876 = vadd.f32 0.0, %v875
    %v877 = vpop.f32.mrf.mxu0
    %v878 = vadd.f32 0.0, %v877
    %879 = vmatmul.bf16.gmra.mxu0 %v774
    %v880 = vpop.f32.mrf.mxu0
    %v881 = vadd.f32 0.0, %v880
    %v882 = vpop.f32.mrf.mxu0
    %v883 = vadd.f32 0.0, %v882
    %884 = vmatmul.bf16.gmra.mxu0 %v775
    %v885 = vpop.f32.mrf.mxu0
    %v886 = vadd.f32 0.0, %v885
    %v887 = vpop.f32.mrf.mxu0
    %v888 = vadd.f32 0.0, %v887
    %889 = vdwg.mxu0
    %v890 = vmax.f32 %v851, 0.0
    %v891 = vmax.f32 %v853, 0.0
    %v892 = vmax.f32 %v856, 0.0
    %v893 = vmax.f32 %v858, 0.0
    %v894 = vmax.f32 %v861, 0.0
    %v895 = vmax.f32 %v863, 0.0
    %v896 = vmax.f32 %v866, 0.0
    %v897 = vmax.f32 %v868, 0.0
    %v898 = vmax.f32 %v871, 0.0
    %v899 = vmax.f32 %v873, 0.0
    %v900 = vmax.f32 %v876, 0.0
    %v901 = vmax.f32 %v878, 0.0
    %v902 = vmax.f32 %v881, 0.0
    %v903 = vmax.f32 %v883, 0.0
    %v904 = vmax.f32 %v886, 0.0
    %v905 = vmax.f32 %v888, 0.0
    %v906 = vpack.c.bf16 %v891, %v890
    %v907 = vpack.c.bf16 %v893, %v892
    %v908 = vpack.c.bf16 %v895, %v894
    %v909 = vpack.c.bf16 %v897, %v896
    %v910 = vpack.c.bf16 %v899, %v898
    %v911 = vpack.c.bf16 %v901, %v900
    %v912 = vpack.c.bf16 %v903, %v902
    %v913 = vpack.c.bf16 %v905, %v904
    %914 = vmatpush.bf16.msra.mxu0 %v913
    %915 = vmatpush.bf16.msra.mxu0 %v912
    %916 = vmatpush.bf16.msra.mxu0 %v911
    %917 = vmatpush.bf16.msra.mxu0 %v910
    %918 = vmatpush.bf16.msra.mxu0 %v909
    %919 = vmatpush.bf16.msra.mxu0 %v908
    %920 = vmatpush.bf16.msra.mxu0 %v907
    %921 = vmatpush.bf16.msra.mxu0 %v906
    %922 = vmatmul.bf16.gmra.mxu0 %v314
    %v923 = vpop.f32.mrf.mxu0
    %v924 = vadd.f32 %v242, %v923
    %v925 = vpop.f32.mrf.mxu0
    %v926 = vadd.f32 %v243, %v925
    %927 = vmatmul.bf16.gmra.mxu0 %v315
    %v928 = vpop.f32.mrf.mxu0
    %v929 = vadd.f32 %v244, %v928
    %v930 = vpop.f32.mrf.mxu0
    %v931 = vadd.f32 %v245, %v930
    %932 = vmatmul.bf16.gmra.mxu0 %v316
    %v933 = vpop.f32.mrf.mxu0
    %v934 = vadd.f32 %v246, %v933
    %v935 = vpop.f32.mrf.mxu0
    %v936 = vadd.f32 %v247, %v935
    %937 = vmatmul.bf16.gmra.mxu0 %v317
    %v938 = vpop.f32.mrf.mxu0
    %v939 = vadd.f32 %v248, %v938
    %v940 = vpop.f32.mrf.mxu0
    %v941 = vadd.f32 %v249, %v940
    %942 = vmatmul.bf16.gmra.mxu0 %v318
    %v943 = vpop.f32.mrf.mxu0
    %v944 = vadd.f32 %v250, %v943
    %v945 = vpop.f32.mrf.mxu0
    %v946 = vadd.f32 %v251, %v945
    %947 = vmatmul.bf16.gmra.mxu0 %v319
    %v948 = vpop.f32.mrf.mxu0
    %v949 = vadd.f32 %v252, %v948
    %v950 = vpop.f32.mrf.mxu0
    %v951 = vadd.f32 %v253, %v950
    %952 = vmatmul.bf16.gmra.mxu0 %v320
    %v953 = vpop.f32.mrf.mxu0
    %v954 = vadd.f32 %v254, %v953
    %v955 = vpop.f32.mrf.mxu0
    %v956 = vadd.f32 %v255, %v955
    %957 = vmatmul.bf16.gmra.mxu0 %v321
    %v958 = vpop.f32.mrf.mxu0
    %v959 = vadd.f32 %v256, %v958
    %v960 = vpop.f32.mrf.mxu0
    %v961 = vadd.f32 %v257, %v960
    %962 = vdwg.mxu0
    %v963 = vpack.c.bf16 %v926, %v924
    %v964 = vpack.c.bf16 %v931, %v929
    %v965 = vpack.c.bf16 %v936, %v934
    %v966 = vpack.c.bf16 %v941, %v939
    %v967 = vpack.c.bf16 %v946, %v944
    %v968 = vpack.c.bf16 %v951, %v949
    %v969 = vpack.c.bf16 %v956, %v954
    %v970 = vpack.c.bf16 %v961, %v959
    %s971 = scalar_lea.vmem [#allocation2], 192
    %v972 = vld [vmem:[%s971] sm:$0xf]
    %v973 = vld [vmem:[%s971 + $0x4] sm:$0xf]
    %v974 = vld [vmem:[%s971 + $0x8] sm:$0xf]
    %v975 = vld [vmem:[%s971 + $0xc] sm:$0xf]
    %v976 = vld [vmem:[%s971 + $0x10] sm:$0xf]
    %v977 = vld [vmem:[%s971 + $0x14] sm:$0xf]
    %v978 = vld [vmem:[%s971 + $0x18] sm:$0xf]
    %v979 = vld [vmem:[%s971 + $0x1c] sm:$0xf]
    %v980 = vld [vmem:[%s971 + $0x20] sm:$0xf]
    %v981 = vld [vmem:[%s971 + $0x24] sm:$0xf]
    %v982 = vld [vmem:[%s971 + $0x28] sm:$0xf]
    %v983 = vld [vmem:[%s971 + $0x2c] sm:$0xf]
    %v984 = vld [vmem:[%s971 + $0x30] sm:$0xf]
    %v985 = vld [vmem:[%s971 + $0x34] sm:$0xf]
    %v986 = vld [vmem:[%s971 + $0x38] sm:$0xf]
    %v987 = vld [vmem:[%s971 + $0x3c] sm:$0xf]
    %v1004 = vunpack.c.l.b16 %v972
    %v1005 = vunpack.c.l.b16 %v973
    %v1006 = vunpack.c.l.b16 %v974
    %v1007 = vunpack.c.l.b16 %v975
    %v1008 = vunpack.c.l.b16 %v976
    %v1009 = vunpack.c.l.b16 %v977
    %v1010 = vunpack.c.l.b16 %v978
    %v1011 = vunpack.c.l.b16 %v979
    %v1012 = vunpack.c.l.b16 %v980
    %v1013 = vunpack.c.l.b16 %v981
    %v1014 = vunpack.c.l.b16 %v982
    %v1015 = vunpack.c.l.b16 %v983
    %v1016 = vunpack.c.l.b16 %v984
    %v1017 = vunpack.c.l.b16 %v985
    %v1018 = vunpack.c.l.b16 %v986
    %v1019 = vunpack.c.l.b16 %v987
    %v1020 = vpack.c.b16 %v1005, %v1004
    %v1021 = vpack.c.b16 %v1007, %v1006
    %v1022 = vpack.c.b16 %v1009, %v1008
    %v1023 = vpack.c.b16 %v1011, %v1010
    %v1024 = vpack.c.b16 %v1013, %v1012
    %v1025 = vpack.c.b16 %v1015, %v1014
    %v1026 = vpack.c.b16 %v1017, %v1016
    %v1027 = vpack.c.b16 %v1019, %v1018
    %1036 = vmatpush.bf16.msra.mxu0 %v1027
    %1037 = vmatpush.bf16.msra.mxu0 %v1026
    %1038 = vmatpush.bf16.msra.mxu0 %v1025
    %1039 = vmatpush.bf16.msra.mxu0 %v1024
    %1040 = vmatpush.bf16.msra.mxu0 %v1023
    %1041 = vmatpush.bf16.msra.mxu0 %v1022
    %1042 = vmatpush.bf16.msra.mxu0 %v1021
    %1043 = vmatpush.bf16.msra.mxu0 %v1020
    %1044 = vmatmul.bf16.gmra.mxu0 %v963
    %v1045 = vpop.f32.mrf.mxu0
    %v1046 = vadd.f32 0.0, %v1045
    %v1047 = vpop.f32.mrf.mxu0
    %v1048 = vadd.f32 0.0, %v1047
    %1049 = vmatmul.bf16.gmra.mxu0 %v964
    %v1050 = vpop.f32.mrf.mxu0
    %v1051 = vadd.f32 0.0, %v1050
    %v1052 = vpop.f32.mrf.mxu0
    %v1053 = vadd.f32 0.0, %v1052
    %1054 = vmatmul.bf16.gmra.mxu0 %v965
    %v1055 = vpop.f32.mrf.mxu0
    %v1056 = vadd.f32 0.0, %v1055
    %v1057 = vpop.f32.mrf.mxu0
    %v1058 = vadd.f32 0.0, %v1057
    %1059 = vmatmul.bf16.gmra.mxu0 %v966
    %v1060 = vpop.f32.mrf.mxu0
    %v1061 = vadd.f32 0.0, %v1060
    %v1062 = vpop.f32.mrf.mxu0
    %v1063 = vadd.f32 0.0, %v1062
    %1064 = vmatmul.bf16.gmra.mxu0 %v967
    %v1065 = vpop.f32.mrf.mxu0
    %v1066 = vadd.f32 0.0, %v1065
    %v1067 = vpop.f32.mrf.mxu0
    %v1068 = vadd.f32 0.0, %v1067
    %1069 = vmatmul.bf16.gmra.mxu0 %v968
    %v1070 = vpop.f32.mrf.mxu0
    %v1071 = vadd.f32 0.0, %v1070
    %v1072 = vpop.f32.mrf.mxu0
    %v1073 = vadd.f32 0.0, %v1072
    %1074 = vmatmul.bf16.gmra.mxu0 %v969
    %v1075 = vpop.f32.mrf.mxu0
    %v1076 = vadd.f32 0.0, %v1075
    %v1077 = vpop.f32.mrf.mxu0
    %v1078 = vadd.f32 0.0, %v1077
    %1079 = vmatmul.bf16.gmra.mxu0 %v970
    %v1080 = vpop.f32.mrf.mxu0
    %v1081 = vadd.f32 0.0, %v1080
    %v1082 = vpop.f32.mrf.mxu0
    %v1083 = vadd.f32 0.0, %v1082
    %1084 = vdwg.mxu0
    %v1085 = vmax.f32 %v1046, 0.0
    %v1086 = vmax.f32 %v1048, 0.0
    %v1087 = vmax.f32 %v1051, 0.0
    %v1088 = vmax.f32 %v1053, 0.0
    %v1089 = vmax.f32 %v1056, 0.0
    %v1090 = vmax.f32 %v1058, 0.0
    %v1091 = vmax.f32 %v1061, 0.0
    %v1092 = vmax.f32 %v1063, 0.0
    %v1093 = vmax.f32 %v1066, 0.0
    %v1094 = vmax.f32 %v1068, 0.0
    %v1095 = vmax.f32 %v1071, 0.0
    %v1096 = vmax.f32 %v1073, 0.0
    %v1097 = vmax.f32 %v1076, 0.0
    %v1098 = vmax.f32 %v1078, 0.0
    %v1099 = vmax.f32 %v1081, 0.0
    %v1100 = vmax.f32 %v1083, 0.0
    %v1101 = vpack.c.bf16 %v1086, %v1085
    %v1102 = vpack.c.bf16 %v1088, %v1087
    %v1103 = vpack.c.bf16 %v1090, %v1089
    %v1104 = vpack.c.bf16 %v1092, %v1091
    %v1105 = vpack.c.bf16 %v1094, %v1093
    %v1106 = vpack.c.bf16 %v1096, %v1095
    %v1107 = vpack.c.bf16 %v1098, %v1097
    %v1108 = vpack.c.bf16 %v1100, %v1099
    %v1109 = vld [vmem:[#allocation5] sm:$0xf]
    %v1110 = vld [vmem:[#allocation5 + $0x4] sm:$0xf]
    %v1111 = vld [vmem:[#allocation5 + $0x8] sm:$0xf]
    %v1112 = vld [vmem:[#allocation5 + $0xc] sm:$0xf]
    %v1113 = vld [vmem:[#allocation5 + $0x10] sm:$0xf]
    %v1114 = vld [vmem:[#allocation5 + $0x14] sm:$0xf]
    %v1115 = vld [vmem:[#allocation5 + $0x18] sm:$0xf]
    %v1116 = vld [vmem:[#allocation5 + $0x1c] sm:$0xf]
    %v1117 = vld [vmem:[#allocation5 + $0x20] sm:$0xf]
    %v1118 = vld [vmem:[#allocation5 + $0x24] sm:$0xf]
    %v1119 = vld [vmem:[#allocation5 + $0x28] sm:$0xf]
    %v1120 = vld [vmem:[#allocation5 + $0x2c] sm:$0xf]
    %v1121 = vld [vmem:[#allocation5 + $0x30] sm:$0xf]
    %v1122 = vld [vmem:[#allocation5 + $0x34] sm:$0xf]
    %v1123 = vld [vmem:[#allocation5 + $0x38] sm:$0xf]
    %v1124 = vld [vmem:[#allocation5 + $0x3c] sm:$0xf]
    %v1125 = vld [vmem:[%s6] sm:$0x1]
    %v1127 = vperm.slane %v1125, 0
    %v1145 = vunpack.c.l.b16 %v1109
    %v1146 = vunpack.c.l.b16 %v1110
    %v1147 = vunpack.c.l.b16 %v1111
    %v1148 = vunpack.c.l.b16 %v1112
    %v1149 = vunpack.c.l.b16 %v1113
    %v1150 = vunpack.c.l.b16 %v1114
    %v1151 = vunpack.c.l.b16 %v1115
    %v1152 = vunpack.c.l.b16 %v1116
    %v1153 = vunpack.c.l.b16 %v1117
    %v1154 = vunpack.c.l.b16 %v1118
    %v1155 = vunpack.c.l.b16 %v1119
    %v1156 = vunpack.c.l.b16 %v1120
    %v1157 = vunpack.c.l.b16 %v1121
    %v1158 = vunpack.c.l.b16 %v1122
    %v1159 = vunpack.c.l.b16 %v1123
    %v1160 = vunpack.c.l.b16 %v1124
    %v1161 = vpack.c.b16 %v1146, %v1145
    %v1162 = vpack.c.b16 %v1148, %v1147
    %v1163 = vpack.c.b16 %v1150, %v1149
    %v1164 = vpack.c.b16 %v1152, %v1151
    %v1165 = vpack.c.b16 %v1154, %v1153
    %v1166 = vpack.c.b16 %v1156, %v1155
    %v1167 = vpack.c.b16 %v1158, %v1157
    %v1168 = vpack.c.b16 %v1160, %v1159
    %1177 = vmatpush.bf16.msra.mxu0 %v1168
    %1178 = vmatpush.bf16.msra.mxu0 %v1167
    %1179 = vmatpush.bf16.msra.mxu0 %v1166
    %1180 = vmatpush.bf16.msra.mxu0 %v1165
    %1181 = vmatpush.bf16.msra.mxu0 %v1164
    %1182 = vmatpush.bf16.msra.mxu0 %v1163
    %1183 = vmatpush.bf16.msra.mxu0 %v1162
    %1184 = vmatpush.bf16.msra.mxu0 %v1161
    %1185 = vmatmul.bf16.gmra.mxu0 %v1101
    %v1186 = vpop.f32.mrf.mxu0
    %v1187 = vadd.f32 %v1127, %v1186
    %v1188 = vpop.f32.mrf.mxu0
    %v1189 = vadd.f32 %v1127, %v1188
    %1190 = vmatmul.bf16.gmra.mxu0 %v1102
    %v1191 = vpop.f32.mrf.mxu0
    %v1192 = vadd.f32 %v1127, %v1191
    %v1193 = vpop.f32.mrf.mxu0
    %v1194 = vadd.f32 %v1127, %v1193
    %1195 = vmatmul.bf16.gmra.mxu0 %v1103
    %v1196 = vpop.f32.mrf.mxu0
    %v1197 = vadd.f32 %v1127, %v1196
    %v1198 = vpop.f32.mrf.mxu0
    %v1199 = vadd.f32 %v1127, %v1198
    %1200 = vmatmul.bf16.gmra.mxu0 %v1104
    %v1201 = vpop.f32.mrf.mxu0
    %v1202 = vadd.f32 %v1127, %v1201
    %v1203 = vpop.f32.mrf.mxu0
    %v1204 = vadd.f32 %v1127, %v1203
    %1205 = vmatmul.bf16.gmra.mxu0 %v1105
    %v1206 = vpop.f32.mrf.mxu0
    %v1207 = vadd.f32 %v1127, %v1206
    %v1208 = vpop.f32.mrf.mxu0
    %v1209 = vadd.f32 %v1127, %v1208
    %1210 = vmatmul.bf16.gmra.mxu0 %v1106
    %v1211 = vpop.f32.mrf.mxu0
    %v1212 = vadd.f32 %v1127, %v1211
    %v1213 = vpop.f32.mrf.mxu0
    %v1214 = vadd.f32 %v1127, %v1213
    %1215 = vmatmul.bf16.gmra.mxu0 %v1107
    %v1216 = vpop.f32.mrf.mxu0
    %v1217 = vadd.f32 %v1127, %v1216
    %v1218 = vpop.f32.mrf.mxu0
    %v1219 = vadd.f32 %v1127, %v1218
    %1220 = vmatmul.bf16.gmra.mxu0 %v1108
    %v1221 = vpop.f32.mrf.mxu0
    %v1222 = vadd.f32 %v1127, %v1221
    %v1223 = vpop.f32.mrf.mxu0
    %v1224 = vadd.f32 %v1127, %v1223
    %1225 = vdwg.mxu0
    %v1226 = vlaneseq
    %v1227 = vand.u32 %v1226, 127
    %vm1228 = vcmp.lt.s32.totalorder %v1227, 16
    %v1229 = vsel %vm1228, %v1187, -1e+30
    %v1230 = vsel %vm1228, %v1189, -1e+30
    %v1231 = vsel %vm1228, %v1192, -1e+30
    %v1232 = vsel %vm1228, %v1194, -1e+30
    %v1233 = vsel %vm1228, %v1197, -1e+30
    %v1234 = vsel %vm1228, %v1199, -1e+30
    %v1235 = vsel %vm1228, %v1202, -1e+30
    %v1236 = vsel %vm1228, %v1204, -1e+30
    %v1237 = vsel %vm1228, %v1207, -1e+30
    %v1238 = vsel %vm1228, %v1209, -1e+30
    %v1239 = vsel %vm1228, %v1212, -1e+30
    %v1240 = vsel %vm1228, %v1214, -1e+30
    %v1241 = vsel %vm1228, %v1217, -1e+30
    %v1242 = vsel %vm1228, %v1219, -1e+30
    %v1243 = vsel %vm1228, %v1222, -1e+30
    %v1244 = vsel %vm1228, %v1224, -1e+30
    %1245 = vmax.xlane.f32.xlu0 %v1229
    %v1246 = vpop.xlane.xlu0 %1245
    %1247 = vmax.xlane.f32.xlu0 %v1230
    %v1248 = vpop.xlane.xlu0 %1247
    %1249 = vmax.xlane.f32.xlu0 %v1231
    %v1250 = vpop.xlane.xlu0 %1249
    %1251 = vmax.xlane.f32.xlu0 %v1232
    %v1252 = vpop.xlane.xlu0 %1251
    %1253 = vmax.xlane.f32.xlu0 %v1233
    %v1254 = vpop.xlane.xlu0 %1253
    %1255 = vmax.xlane.f32.xlu0 %v1234
    %v1256 = vpop.xlane.xlu0 %1255
    %1257 = vmax.xlane.f32.xlu0 %v1235
    %v1258 = vpop.xlane.xlu0 %1257
    %1259 = vmax.xlane.f32.xlu0 %v1236
    %v1260 = vpop.xlane.xlu0 %1259
    %1261 = vmax.xlane.f32.xlu0 %v1237
    %v1262 = vpop.xlane.xlu0 %1261
    %1263 = vmax.xlane.f32.xlu0 %v1238
    %v1264 = vpop.xlane.xlu0 %1263
    %1265 = vmax.xlane.f32.xlu0 %v1239
    %v1266 = vpop.xlane.xlu0 %1265
    %1267 = vmax.xlane.f32.xlu0 %v1240
    %v1268 = vpop.xlane.xlu0 %1267
    %1269 = vmax.xlane.f32.xlu0 %v1241
    %v1270 = vpop.xlane.xlu0 %1269
    %1271 = vmax.xlane.f32.xlu0 %v1242
    %v1272 = vpop.xlane.xlu0 %1271
    %1273 = vmax.xlane.f32.xlu0 %v1243
    %v1274 = vpop.xlane.xlu0 %1273
    %1275 = vmax.xlane.f32.xlu0 %v1244
    %v1276 = vpop.xlane.xlu0 %1275
    %v1277 = vsub.f32 %v1229, %v1246
    %v1278 = vsub.f32 %v1230, %v1248
    %v1279 = vsub.f32 %v1231, %v1250
    %v1280 = vsub.f32 %v1232, %v1252
    %v1281 = vsub.f32 %v1233, %v1254
    %v1282 = vsub.f32 %v1234, %v1256
    %v1283 = vsub.f32 %v1235, %v1258
    %v1284 = vsub.f32 %v1236, %v1260
    %v1285 = vsub.f32 %v1237, %v1262
    %v1286 = vsub.f32 %v1238, %v1264
    %v1287 = vsub.f32 %v1239, %v1266
    %v1288 = vsub.f32 %v1240, %v1268
    %v1289 = vsub.f32 %v1241, %v1270
    %v1290 = vsub.f32 %v1242, %v1272
    %v1291 = vsub.f32 %v1243, %v1274
    %v1292 = vsub.f32 %v1244, %v1276
    %v1293 = vmul.f32 %v1277, 1.442695
    %v1294 = vpow.pop %v1293
    %v1295 = vmul.f32 %v1278, 1.442695
    %v1296 = vpow.pop %v1295
    %v1297 = vmul.f32 %v1279, 1.442695
    %v1298 = vpow.pop %v1297
    %v1299 = vmul.f32 %v1280, 1.442695
    %v1300 = vpow.pop %v1299
    %v1301 = vmul.f32 %v1281, 1.442695
    %v1302 = vpow.pop %v1301
    %v1303 = vmul.f32 %v1282, 1.442695
    %v1304 = vpow.pop %v1303
    %v1305 = vmul.f32 %v1283, 1.442695
    %v1306 = vpow.pop %v1305
    %v1307 = vmul.f32 %v1284, 1.442695
    %v1308 = vpow.pop %v1307
    %v1309 = vmul.f32 %v1285, 1.442695
    %v1310 = vpow.pop %v1309
    %v1311 = vmul.f32 %v1286, 1.442695
    %v1312 = vpow.pop %v1311
    %v1313 = vmul.f32 %v1287, 1.442695
    %v1314 = vpow.pop %v1313
    %v1315 = vmul.f32 %v1288, 1.442695
    %v1316 = vpow.pop %v1315
    %v1317 = vmul.f32 %v1289, 1.442695
    %v1318 = vpow.pop %v1317
    %v1319 = vmul.f32 %v1290, 1.442695
    %v1320 = vpow.pop %v1319
    %v1321 = vmul.f32 %v1291, 1.442695
    %v1322 = vpow.pop %v1321
    %v1323 = vmul.f32 %v1292, 1.442695
    %v1324 = vpow.pop %v1323
    %1325 = vadd.xlane.f32.xlu0 %v1294
    %v1326 = vpop.xlane.xlu0 %1325
    %1327 = vadd.xlane.f32.xlu0 %v1296
    %v1328 = vpop.xlane.xlu0 %1327
    %1329 = vadd.xlane.f32.xlu0 %v1298
    %v1330 = vpop.xlane.xlu0 %1329
    %1331 = vadd.xlane.f32.xlu0 %v1300
    %v1332 = vpop.xlane.xlu0 %1331
    %1333 = vadd.xlane.f32.xlu0 %v1302
    %v1334 = vpop.xlane.xlu0 %1333
    %1335 = vadd.xlane.f32.xlu0 %v1304
    %v1336 = vpop.xlane.xlu0 %1335
    %1337 = vadd.xlane.f32.xlu0 %v1306
    %v1338 = vpop.xlane.xlu0 %1337
    %1339 = vadd.xlane.f32.xlu0 %v1308
    %v1340 = vpop.xlane.xlu0 %1339
    %1341 = vadd.xlane.f32.xlu0 %v1310
    %v1342 = vpop.xlane.xlu0 %1341
    %1343 = vadd.xlane.f32.xlu0 %v1312
    %v1344 = vpop.xlane.xlu0 %1343
    %1345 = vadd.xlane.f32.xlu0 %v1314
    %v1346 = vpop.xlane.xlu0 %1345
    %1347 = vadd.xlane.f32.xlu0 %v1316
    %v1348 = vpop.xlane.xlu0 %1347
    %1349 = vadd.xlane.f32.xlu0 %v1318
    %v1350 = vpop.xlane.xlu0 %1349
    %1351 = vadd.xlane.f32.xlu0 %v1320
    %v1352 = vpop.xlane.xlu0 %1351
    %1353 = vadd.xlane.f32.xlu0 %v1322
    %v1354 = vpop.xlane.xlu0 %1353
    %1355 = vadd.xlane.f32.xlu0 %v1324
    %v1356 = vpop.xlane.xlu0 %1355
    %v1357 = vlog2.pop %v1326
    %v1358 = vmul.f32 %v1357, 0.6931472
    %v1359 = vlog2.pop %v1328
    %v1360 = vmul.f32 %v1359, 0.6931472
    %v1361 = vlog2.pop %v1330
    %v1362 = vmul.f32 %v1361, 0.6931472
    %v1363 = vlog2.pop %v1332
    %v1364 = vmul.f32 %v1363, 0.6931472
    %v1365 = vlog2.pop %v1334
    %v1366 = vmul.f32 %v1365, 0.6931472
    %v1367 = vlog2.pop %v1336
    %v1368 = vmul.f32 %v1367, 0.6931472
    %v1369 = vlog2.pop %v1338
    %v1370 = vmul.f32 %v1369, 0.6931472
    %v1371 = vlog2.pop %v1340
    %v1372 = vmul.f32 %v1371, 0.6931472
    %v1373 = vlog2.pop %v1342
    %v1374 = vmul.f32 %v1373, 0.6931472
    %v1375 = vlog2.pop %v1344
    %v1376 = vmul.f32 %v1375, 0.6931472
    %v1377 = vlog2.pop %v1346
    %v1378 = vmul.f32 %v1377, 0.6931472
    %v1379 = vlog2.pop %v1348
    %v1380 = vmul.f32 %v1379, 0.6931472
    %v1381 = vlog2.pop %v1350
    %v1382 = vmul.f32 %v1381, 0.6931472
    %v1383 = vlog2.pop %v1352
    %v1384 = vmul.f32 %v1383, 0.6931472
    %v1385 = vlog2.pop %v1354
    %v1386 = vmul.f32 %v1385, 0.6931472
    %v1387 = vlog2.pop %v1356
    %v1388 = vmul.f32 %v1387, 0.6931472
    %v1389 = vsub.f32 %v1277, %v1358
    %v1390 = vsub.f32 %v1278, %v1360
    %v1391 = vsub.f32 %v1279, %v1362
    %v1392 = vsub.f32 %v1280, %v1364
    %v1393 = vsub.f32 %v1281, %v1366
    %v1394 = vsub.f32 %v1282, %v1368
    %v1395 = vsub.f32 %v1283, %v1370
    %v1396 = vsub.f32 %v1284, %v1372
    %v1397 = vsub.f32 %v1285, %v1374
    %v1398 = vsub.f32 %v1286, %v1376
    %v1399 = vsub.f32 %v1287, %v1378
    %v1400 = vsub.f32 %v1288, %v1380
    %v1401 = vsub.f32 %v1289, %v1382
    %v1402 = vsub.f32 %v1290, %v1384
    %v1403 = vsub.f32 %v1291, %v1386
    %v1404 = vsub.f32 %v1292, %v1388
    %1405 = vst [vmem:[#allocation7] sm:$0xff] %v1389
    %1406 = vst [vmem:[#allocation7 + $0x8] sm:$0xff] %v1390
    %1407 = vst [vmem:[#allocation7 + $0x10] sm:$0xff] %v1391
    %1408 = vst [vmem:[#allocation7 + $0x18] sm:$0xff] %v1392
    %1409 = vst [vmem:[#allocation7 + $0x20] sm:$0xff] %v1393
    %1410 = vst [vmem:[#allocation7 + $0x28] sm:$0xff] %v1394
    %1411 = vst [vmem:[#allocation7 + $0x30] sm:$0xff] %v1395
    %1412 = vst [vmem:[#allocation7 + $0x38] sm:$0xff] %v1396
    %1413 = vst [vmem:[#allocation7 + $0x40] sm:$0xff] %v1397
    %1414 = vst [vmem:[#allocation7 + $0x48] sm:$0xff] %v1398
    %1415 = vst [vmem:[#allocation7 + $0x50] sm:$0xff] %v1399
    %1416 = vst [vmem:[#allocation7 + $0x58] sm:$0xff] %v1400
    %1417 = vst [vmem:[#allocation7 + $0x60] sm:$0xff] %v1401
    %1418 = vst [vmem:[#allocation7 + $0x68] sm:$0xff] %v1402
    %1419 = vst [vmem:[#allocation7 + $0x70] sm:$0xff] %v1403
    %1420 = vst [vmem:[#allocation7 + $0x78] sm:$0xff] %v1404
    // Predicated region
    $region38: #{tpu_custom_call.1} parent=1 // pred_check
      _
    $region39: #{tpu_custom_call.1} parent=1 // pred_check_branch
      %1422 = sbr.rel (0) target = $region41
    $region40: #{tpu_custom_call.1} parent=1 // pred_region
      %1424 = vsyncadd [#allocation4], 0
      %s1425 = sshll.u32 [#allocation7], 4
      %s1426 = int_to_ptr.vmem [resolvable:$true] %s1425
      %s1427 = sshll.u32 %s7, 4
      %s1428 = int_to_ptr.hbm [resolvable:$true] %s1427
      %1433 = dma.vmem_to_hbm [thread:$0]  %s1426, 2048, %s1428, [#allocation4], 128, 128, 8
    $region41: #{tpu_custom_call.1} parent=1 // pred_fallthru
      _
    // Predicated region
    $region42: #{tpu_custom_call.1} parent=1 // pred_check
      _
    $region43: #{tpu_custom_call.1} parent=1 // pred_check_branch
      %1435 = sbr.rel (0) target = $region45
    $region44: #{tpu_custom_call.1} parent=1 // pred_region
      %1437 = dma.done [#allocation4], 2048
    $region45: #{tpu_custom_call.1} parent=1 // pred_fallthru
      _
    %1438 = vsyncpa [#allocation3], 1
    %1439 = vsyncpa [#allocation6], 1
    %1440 = vsyncpa [#allocation4], 1

</llo_original>
